<compile_context>
chip_gen: v5e
topology: v5e:2x2
jax: 0.10.0
libtpu: 0.0.40
codegen_flags: <defaults>
</compile_context>

<pallas_src>
import functools

import jax
import jax.numpy as jnp
from jax.experimental import pallas as pl
from jax.experimental.pallas import tpu as pltpu


def _layer_norm(x, w, b, eps):
    mu = jnp.mean(x, axis=-1, keepdims=True)
    var = jnp.mean((x - mu) ** 2, axis=-1, keepdims=True)
    return (x - mu) * jax.lax.rsqrt(var + eps) * w + b


def encoder_layers_kernel(bias_ref, x_ref,
                          wqkv_ref, wo_ref, w1_ref, w2_ref, vec_ref,
                          out_ref,
                          *, heads, head_dim, embed_size, hidden, f_chunk,
                          nb, seq_len, eps=1e-5):
    H, hd, E, F, L = heads, head_dim, embed_size, hidden, seq_len
    R = nb * L                        # rows in this batch block
    cd = wqkv_ref.dtype               # matmul operand dtype (f32 or bf16)

    layer = pl.program_id(1)

    # Layer 0 of this batch block: seed the resident output block with embeddings.
    @pl.when(layer == 0)
    def _():
        out_ref[...] = x_ref[...]

    x = out_ref[...].reshape(R, E)                        # resident activation, f32
    x_cd = x.astype(cd)

    # ---- attention mask bias (precomputed in the wrapper) -------------------
    bias = bias_ref[...]                                  # (nb, 1, Lk), 0 / -1e20
    bias_bh = jnp.broadcast_to(bias[:, None, :, :],
                               (nb, H, 1, L)).reshape(nb * H, 1, L)

    # ---- fused block-diagonal QKV projection (scale folded into Wq) ---------
    qkv = jnp.dot(x_cd, wqkv_ref[0],
                  preferred_element_type=jnp.float32)     # (R, 3E) f32

    def split_heads(seg):                                 # (R, E) -> (nb*H, L, hd)
        return jnp.transpose(seg.reshape(nb, L, H, hd),
                             (0, 2, 1, 3)).reshape(nb * H, L, hd)

    q = split_heads(qkv[:, 0 * E:1 * E]).astype(cd)
    k = split_heads(qkv[:, 1 * E:2 * E]).astype(cd)
    v = split_heads(qkv[:, 2 * E:3 * E]).astype(cd)

    # ---- all-heads batched attention ----------------------------------------
    energy = jnp.einsum('bqd,bkd->bqk', q, k,
                        preferred_element_type=jnp.float32) + bias_bh
    m = jnp.max(energy, axis=-1, keepdims=True)
    p = jnp.exp(energy - m)
    p = p / jnp.sum(p, axis=-1, keepdims=True)            # exact (parity w/ reference)
    ctx = jnp.einsum('bqk,bkd->bqd', p.astype(cd), v,
                     preferred_element_type=jnp.float32)  # (nb*H, L, hd)
    attn = jnp.transpose(ctx.reshape(nb, H, L, hd),
                         (0, 2, 1, 3)).reshape(R, E)      # lane-dense (R, E)

    # ---- packed bias / LayerNorm vectors -------------------------------------
    vec = vec_ref[0]                                      # (8, Fmax) f32
    bo, ln1w, ln1b = vec[0:1, :E], vec[1:2, :E], vec[2:3, :E]
    b1 = vec[3:4, :F]
    b2, ln2w, ln2b = vec[4:5, :E], vec[5:6, :E], vec[6:7, :E]

    # ---- fc_out + residual + LayerNorm1 --------------------------------------
    a_out = jnp.dot(attn.astype(cd), wo_ref[0],
                    preferred_element_type=jnp.float32) + bo
    x1 = _layer_norm(a_out + x, ln1w, ln1b, eps)
    x1_cd = x1.astype(cd)

    # ---- feed-forward chunked over F + residual + LayerNorm2 -----------------
    ff = jnp.zeros((R, E), jnp.float32)
    for c in range(F // f_chunk):
        f0 = c * f_chunk
        h1c = jnp.dot(x1_cd, w1_ref[0, :, f0:f0 + f_chunk],
                      preferred_element_type=jnp.float32)
        h1c = jnp.maximum(h1c + b1[:, f0:f0 + f_chunk], 0.0)
        ff = ff + jnp.dot(h1c.astype(cd), w2_ref[0, f0:f0 + f_chunk, :],
                          preferred_element_type=jnp.float32)
    ff = ff + b2

    result = _layer_norm(ff + x1, ln2w, ln2b, eps)
    out_ref[...] = result.reshape(nb, L, E)               # carrier -> next layer


def pack_layer_params(p, heads, scale):
    """Per-layer (in,out)-oriented params -> kernel-layout arrays."""
    E = p["wo"].shape[0]
    F = p["w1"].shape[1]
    Fmax = max(E, F)
    eye_h = jnp.eye(heads, dtype=jnp.float32)
    wq_bd = jnp.kron(eye_h, p["wq"]) * scale              # fold softmax scale into Wq
    wk_bd = jnp.kron(eye_h, p["wk"])
    wv_bd = jnp.kron(eye_h, p["wv"])
    wqkv = jnp.concatenate([wq_bd, wk_bd, wv_bd], axis=1)  # (E, 3E)

    def pad_row(v, width):
        return jnp.pad(v.reshape(1, -1).astype(jnp.float32),
                       ((0, 0), (0, Fmax - width)))

    vec = jnp.concatenate([
        pad_row(p["bo"], E), pad_row(p["ln1w"], E), pad_row(p["ln1b"], E),
        pad_row(p["b1"], F), pad_row(p["b2"], E),
        pad_row(p["ln2w"], E), pad_row(p["ln2b"], E),
        jnp.zeros((1, Fmax), jnp.float32)], axis=0)       # (8, Fmax)
    return wqkv, p["wo"], p["w1"], p["w2"], vec


def _pick_f_chunk(F, target=512):
    """Largest 128-multiple <= target that divides F, else F itself."""
    if F <= target:
        return F
    best = F
    for cand in range(128, target + 1, 128):
        if F % cand == 0:
            best = cand
    return best


def encoder_forward(params, tokens, mask, *, heads, embed_size,
                    batch_block=None, use_bf16_matmul=False):
    """tokens: (N, L) int32, mask: (N, 1, L) key mask (1 = attend). Returns (N, L, E)."""
    N, L = tokens.shape
    E = embed_size
    hd = E // heads
    num_layers = len(params["layers"])
    F = params["layers"][0]["w1"].shape[1]
    Fmax = max(E, F)

    # batch_block: bigger amortizes weight re-streaming; >=2 blocks keeps both v7x
    # TensorCores busy.  Tune against VMEM.
    if batch_block is None:
        batch_block = N if N < 2 or N % 2 else N // 2
    NB = batch_block
    assert N % NB == 0, "batch_block must divide batch size"
    R = NB * L
    blocks = N // NB

    f_chunk = _pick_f_chunk(F)
    assert F % f_chunk == 0

    scale = 1.0 / (embed_size ** 0.5)     # reference divides energy by sqrt(embed_size)

    packed = [pack_layer_params(p, heads, scale) for p in params["layers"]]
    wqkv = jnp.stack([t[0] for t in packed])              # (nl, E, 3E)
    wo = jnp.stack([t[1] for t in packed])                # (nl, E, E)
    w1 = jnp.stack([t[2] for t in packed])                # (nl, E, F)
    w2 = jnp.stack([t[3] for t in packed])                # (nl, F, E)
    vec = jnp.stack([t[4] for t in packed])               # (nl, 8, Fmax) f32

    # bf16 weights halve both VMEM residency and HBM weight traffic; beneficial on
    # v5e, v6e and v7x (accumulation stays f32).  f32 kept here for tight parity.
    wdt = jnp.bfloat16 if use_bf16_matmul else jnp.float32
    wqkv, wo, w1, w2 = (w.astype(wdt) for w in (wqkv, wo, w1, w2))
    wbytes = 2 if use_bf16_matmul else 4

    # Embedding lookups (gather) kept in plain JAX glue. Dropout == identity (eval).
    # TODO(synk): embedding gather could be fused into layer 0 via scalar-prefetch
    # row-gather (PrefetchScalarGridSpec + pl.Element), saving one (N,L,E) HBM pass.
    positions = jnp.arange(L, dtype=jnp.int32)
    x = (params["word_emb"][tokens]
         + params["pos_emb"][positions][None, :, :]).astype(jnp.float32)   # (N, L, E)
    mask_bias = jnp.where(mask.reshape(N, 1, L) == 0,
                          jnp.float32(-1e20), jnp.float32(0.0))            # (N, 1, L)

    # ---- explicit VMEM budget (double-buffered weights + I/O + intermediates) ----
    per_layer_w = (E * 3 * E + E * E + E * F + F * E) * wbytes
    vec_b = 8 * Fmax * 4
    blk_io = (NB * L + 2 * NB * L * E) * 4
    interm = (R * 3 * E + 3 * NB * heads * L * hd + 2 * NB * heads * L * L
              + 6 * R * E + R * f_chunk) * 4
    vmem_need = 2 * (per_layer_w + vec_b + blk_io) + interm
    try:
        phys_vmem = pltpu.get_tpu_info().vmem_capacity_bytes
    except Exception:
        phys_vmem = 64 << 20
    vmem_limit = int(min(max(2 * vmem_need + (8 << 20), 32 << 20), phys_vmem))

    # ---- cost estimate so XLA schedules surrounding glue around the fused call ----
    flops_per = (2 * R * E * 3 * E + 4 * NB * heads * L * L * hd
                 + 2 * R * E * E + 4 * R * E * F)
    cost = pl.CostEstimate(
        flops=flops_per * num_layers * blocks,
        transcendentals=NB * heads * L * L * num_layers * blocks,
        bytes_accessed=(per_layer_w + vec_b) * num_layers * blocks
                       + (2 * N * L * E + N * L) * 4)

    kern = functools.partial(encoder_layers_kernel,
                             heads=heads, head_dim=hd, embed_size=E, hidden=F,
                             f_chunk=f_chunk, nb=NB, seq_len=L)

    def layer_spec(shape):
        return pl.BlockSpec((1,) + shape, lambda b, l: (l, 0, 0))

    out = pl.pallas_call(
        kern,
        out_shape=jax.ShapeDtypeStruct((N, L, E), jnp.float32),
        grid=(blocks, num_layers),
        in_specs=[
            pl.BlockSpec((NB, 1, L), lambda b, l: (b, 0, 0)),   # mask bias
            pl.BlockSpec((NB, L, E), lambda b, l: (b, 0, 0)),   # embeddings
            layer_spec((E, 3 * E)),                             # fused block-diag QKV
            layer_spec((E, E)),                                 # fc_out weight
            layer_spec((E, F)),                                 # FFN W1
            layer_spec((F, E)),                                 # FFN W2
            layer_spec((8, Fmax)),                              # packed biases / LN
        ],
        out_specs=pl.BlockSpec((NB, L, E), lambda b, l: (b, 0, 0)),
        compiler_params=pltpu.CompilerParams(
            dimension_semantics=("parallel", "arbitrary"),
            vmem_limit_bytes=vmem_limit),
        cost_estimate=cost,
    )(mask_bias, x, wqkv, wo, w1, w2, vec)

    return out


# ---------------------------- pure-JAX reference -------------------------------
def encoder_forward_ref(params, tokens, mask, *, heads, embed_size, eps=1e-5):
    N, L = tokens.shape
    E = embed_size
    hd = E // heads
    hp = jax.lax.Precision.HIGHEST
    x = (params["word_emb"][tokens]
         + params["pos_emb"][jnp.arange(L)][None, :, :]).astype(jnp.float32)
    key_mask = mask.reshape(N, 1, 1, L)
    for p in params["layers"]:
        xh = x.reshape(N, L, heads, hd)
        q = jnp.einsum('nlhd,de->nlhe', xh, p["wq"], precision=hp)
        k = jnp.einsum('nlhd,de->nlhe', xh, p["wk"], precision=hp)
        v = jnp.einsum('nlhd,de->nlhe', xh, p["wv"], precision=hp)
        energy = jnp.einsum('nqhd,nkhd->nhqk', q, k, precision=hp)
        energy = jnp.where(key_mask == 0.0, jnp.float32(-1e20), energy)
        attn = jax.nn.softmax(energy / (E ** 0.5), axis=-1)
        ctx = jnp.einsum('nhqk,nkhd->nqhd', attn, v, precision=hp).reshape(N, L, E)
        a = jnp.einsum('nle,ef->nlf', ctx, p["wo"], precision=hp) + p["bo"]
        x1 = _layer_norm(a + x, p["ln1w"], p["ln1b"], eps)
        h = jnp.maximum(jnp.einsum('nle,ef->nlf', x1, p["w1"], precision=hp)
                        + p["b1"], 0.0)
        ff = jnp.einsum('nlf,fe->nle', h, p["w2"], precision=hp) + p["b2"]
        x = _layer_norm(ff + x1, p["ln2w"], p["ln2b"], eps)
    return x


def init_encoder_params(key, *, src_vocab_size, embed_size, num_layers, heads,
                        forward_expansion, max_length):
    hd = embed_size // heads
    F = forward_expansion * embed_size
    keys = jax.random.split(key, 2 + num_layers)

    word_emb = 0.02 * jax.random.normal(keys[0], (src_vocab_size, embed_size), jnp.float32)
    pos_emb = 0.02 * jax.random.normal(keys[1], (max_length, embed_size), jnp.float32)

    layers = []
    for li in range(num_layers):
        ks = jax.random.split(keys[2 + li], 8)
        # all weights stored as (in_features, out_features)
        layers.append(dict(
            wq=0.1 * jax.random.normal(ks[0], (hd, hd), jnp.float32),
            wk=0.1 * jax.random.normal(ks[1], (hd, hd), jnp.float32),
            wv=0.1 * jax.random.normal(ks[2], (hd, hd), jnp.float32),
            wo=0.1 * jax.random.normal(ks[3], (embed_size, embed_size), jnp.float32),
            bo=0.01 * jax.random.normal(ks[4], (embed_size,), jnp.float32),
            ln1w=jnp.ones((embed_size,), jnp.float32),
            ln1b=jnp.zeros((embed_size,), jnp.float32),
            w1=0.1 * jax.random.normal(ks[5], (embed_size, F), jnp.float32),
            b1=0.01 * jax.random.normal(ks[6], (F,), jnp.float32),
            w2=0.1 * jax.random.normal(ks[7], (F, embed_size), jnp.float32),
            b2=jnp.zeros((embed_size,), jnp.float32),
            ln2w=jnp.ones((embed_size,), jnp.float32),
            ln2b=jnp.zeros((embed_size,), jnp.float32),
        ))
    return dict(word_emb=word_emb, pos_emb=pos_emb, layers=layers)


if __name__ == "__main__":
    # small shapes: batch=2, seq=8, embed=32, heads=4 (head_dim=8),
    # forward_expansion=2, num_layers=2, vocab=50, max_length=16
    N, L = 2, 8
    embed_size, heads = 32, 4
    src_vocab_size, max_length = 50, 16
    num_layers, forward_expansion = 2, 2

    root = jax.random.PRNGKey(0)
    k_params, k_tok = jax.random.split(root)

    params = init_encoder_params(
        k_params, src_vocab_size=src_vocab_size, embed_size=embed_size,
        num_layers=num_layers, heads=heads,
        forward_expansion=forward_expansion, max_length=max_length)

    tokens = jax.random.randint(k_tok, (N, L), 0, src_vocab_size, dtype=jnp.int32)
    mask = jnp.ones((N, 1, L), jnp.float32)           # 1 = attend
    mask = mask.at[1, 0, L - 1].set(0.0)              # mask one key to exercise bias

    out = encoder_forward(params, tokens, mask, heads=heads, embed_size=embed_size,
                          batch_block=1,              # 2 batch blocks (both v7x TCs)
                          use_bf16_matmul=False)      # bf16 recommended for real shapes
    out = jax.block_until_ready(out)

    ref = encoder_forward_ref(params, tokens, mask, heads=heads, embed_size=embed_size)
    ref = jax.block_until_ready(ref)

    assert out.shape == (N, L, embed_size)
    assert bool(jnp.all(jnp.isfinite(out)))
    max_err = float(jnp.max(jnp.abs(out - ref)))
    assert max_err < 2e-2, f"mismatch vs reference: max abs err {max_err}"
    print("KERNEL_OK")
</pallas_src>

<mosaic_0001>
module attributes {stable_mosaic.version = 11 : i64} {
  func.func @encoder_layers_kernel(%arg0: i32, %arg1: i32, %arg2: memref<1x1x8xf32, #tpu.memory_space<vmem>>, %arg3: memref<1x8x32xf32, #tpu.memory_space<vmem>>, %arg4: memref<1x32x96xf32, #tpu.memory_space<vmem>>, %arg5: memref<1x32x32xf32, #tpu.memory_space<vmem>>, %arg6: memref<1x32x64xf32, #tpu.memory_space<vmem>>, %arg7: memref<1x64x32xf32, #tpu.memory_space<vmem>>, %arg8: memref<1x8x64xf32, #tpu.memory_space<vmem>>, %arg9: memref<1x8x32xf32, #tpu.memory_space<vmem>>) attributes {dimension_semantics = [#tpu.dimension_semantics<parallel>, #tpu.dimension_semantics<arbitrary>], iteration_bounds = array<i64: 2, 2>, scalar_prefetch = 0 : i64, scratch_operands = 0 : i64, tpu.core_type = #tpu.core_type<tc>, window_params = [{transform_indices = @transform_0, window_bounds = array<i64: 1, 1, 8>}, {transform_indices = @transform_1, window_bounds = array<i64: 1, 8, 32>}, {transform_indices = @transform_2, window_bounds = array<i64: 1, 32, 96>}, {transform_indices = @transform_3, window_bounds = array<i64: 1, 32, 32>}, {transform_indices = @transform_4, window_bounds = array<i64: 1, 32, 64>}, {transform_indices = @transform_5, window_bounds = array<i64: 1, 64, 32>}, {transform_indices = @transform_6, window_bounds = array<i64: 1, 8, 64>}, {transform_indices = @transform_7, window_bounds = array<i64: 1, 8, 32>}]} {
    %c0_i32 = arith.constant 0 : i32
    %0 = arith.cmpi eq, %arg1, %c0_i32 : i32
    %1 = arith.extui %0 : i1 to i32
    %c0_i32_0 = arith.constant 0 : i32
    %2 = arith.cmpi ne, %1, %c0_i32_0 : i32
    scf.if %2 {
      %c0_43 = arith.constant 0 : index
      %c0_44 = arith.constant 0 : index
      %c0_45 = arith.constant 0 : index
      %117 = vector.load %arg3[%c0_43, %c0_44, %c0_45] : memref<1x8x32xf32, #tpu.memory_space<vmem>>, vector<1x8x32xf32>
      %c0_46 = arith.constant 0 : index
      %c0_47 = arith.constant 0 : index
      %c0_48 = arith.constant 0 : index
      %118 = vector.load %arg9[%c0_46, %c0_47, %c0_48] : memref<1x8x32xf32, #tpu.memory_space<vmem>>, vector<1x8x32xf32>
      tpu.vector_store %arg9[%c0_46, %c0_47, %c0_48], %117 {strides = array<i32>} : memref<1x8x32xf32, #tpu.memory_space<vmem>>, vector<1x8x32xf32>,
    } else {
    }
    %c0 = arith.constant 0 : index
    %c0_1 = arith.constant 0 : index
    %c0_2 = arith.constant 0 : index
    %3 = vector.load %arg9[%c0, %c0_1, %c0_2] : memref<1x8x32xf32, #tpu.memory_space<vmem>>, vector<1x8x32xf32>
    %4 = vector.shape_cast %3 : vector<1x8x32xf32> to vector<8x32xf32>
    %c0_3 = arith.constant 0 : index
    %c0_4 = arith.constant 0 : index
    %c0_5 = arith.constant 0 : index
    %5 = vector.load %arg2[%c0_3, %c0_4, %c0_5] : memref<1x1x8xf32, #tpu.memory_space<vmem>>, vector<1x1x8xf32>
    %6 = vector.shape_cast %5 : vector<1x1x8xf32> to vector<1x1x1x8xf32>
    %7 = vector.shape_cast %6 : vector<1x1x1x8xf32> to vector<1x1x1x8xf32>
    %8 = vector.broadcast %7 : vector<1x1x1x8xf32> to vector<1x4x1x8xf32>
    %9 = vector.shape_cast %8 : vector<1x4x1x8xf32> to vector<4x1x8xf32>
    %c0_6 = arith.constant 0 : index
    %c0_7 = arith.constant 0 : index
    %c0_8 = arith.constant 0 : index
    %10 = vector.load %arg4[%c0_6, %c0_7, %c0_8] : memref<1x32x96xf32, #tpu.memory_space<vmem>>, vector<1x32x96xf32>
    %11 = vector.shape_cast %10 : vector<1x32x96xf32> to vector<32x96xf32>
    %cst = arith.constant dense<0.000000e+00> : vector<8x96xf32>
    %12 = tpu.matmul %4, %11, %cst {dimension_numbers = #tpu.dot_dimension_numbers<[1], [0], [0], [1], [0, 0, 1, 1], [], []>} : vector<8x32xf32>, vector<32x96xf32>, vector<8x96xf32> -> vector<8x96xf32>
    %13 = vector.extract_strided_slice %12 {offsets = [0, 0], sizes = [8, 32], strides = [1, 1]} : vector<8x96xf32> to vector<8x32xf32>
    %14 = vector.shape_cast %13 : vector<8x32xf32> to vector<1x8x4x8xf32>
    %15 = tpu.transpose %14, [0, 2, 1, 3] : vector<1x8x4x8xf32> -> vector<1x4x8x8xf32>
    %16 = vector.shape_cast %15 : vector<1x4x8x8xf32> to vector<4x8x8xf32>
    %17 = vector.extract_strided_slice %12 {offsets = [0, 32], sizes = [8, 32], strides = [1, 1]} : vector<8x96xf32> to vector<8x32xf32>
    %18 = vector.shape_cast %17 : vector<8x32xf32> to vector<1x8x4x8xf32>
    %19 = tpu.transpose %18, [0, 2, 1, 3] : vector<1x8x4x8xf32> -> vector<1x4x8x8xf32>
    %20 = vector.shape_cast %19 : vector<1x4x8x8xf32> to vector<4x8x8xf32>
    %21 = vector.extract_strided_slice %12 {offsets = [0, 64], sizes = [8, 32], strides = [1, 1]} : vector<8x96xf32> to vector<8x32xf32>
    %22 = vector.shape_cast %21 : vector<8x32xf32> to vector<1x8x4x8xf32>
    %23 = tpu.transpose %22, [0, 2, 1, 3] : vector<1x8x4x8xf32> -> vector<1x4x8x8xf32>
    %24 = vector.shape_cast %23 : vector<1x4x8x8xf32> to vector<4x8x8xf32>
    "tpu.trace_start"() <{level = 10 : i32, message = "bqd,bkd->bqk"}> : () -> ()
    %cst_9 = arith.constant dense<0.000000e+00> : vector<4x8x8xf32>
    %25 = tpu.matmul %16, %20, %cst_9 {dimension_numbers = #tpu.dot_dimension_numbers<[2], [2], [1], [1], [0, 0, 0, 1, 1, 1], [0], [0]>} : vector<4x8x8xf32>, vector<4x8x8xf32>, vector<4x8x8xf32> -> vector<4x8x8xf32>
    "tpu.trace_stop"() : () -> ()
    %26 = vector.broadcast %9 : vector<4x1x8xf32> to vector<4x8x8xf32>
    %27 = arith.addf %25, %26 : vector<4x8x8xf32>
    %cst_10 = arith.constant dense<0xFF800000> : vector<4x8xf32>
    %28 = vector.multi_reduction <maximumf>, %27, %cst_10 [2] : vector<4x8x8xf32> to vector<4x8xf32>
    %29 = vector.shape_cast %28 : vector<4x8xf32> to vector<4x8x1xf32>
    %30 = vector.broadcast %29 : vector<4x8x1xf32> to vector<4x8x8xf32>
    %31 = arith.subf %27, %30 : vector<4x8x8xf32>
    %32 = math.exp %31 : vector<4x8x8xf32>
    %cst_11 = arith.constant dense<0.000000e+00> : vector<4x8xf32>
    %33 = vector.multi_reduction <add>, %32, %cst_11 [2] : vector<4x8x8xf32> to vector<4x8xf32>
    %34 = vector.shape_cast %33 : vector<4x8xf32> to vector<4x8x1xf32>
    %35 = vector.broadcast %34 : vector<4x8x1xf32> to vector<4x8x8xf32>
    %36 = arith.divf %32, %35 : vector<4x8x8xf32>
    "tpu.trace_start"() <{level = 10 : i32, message = "bqk,bkd->bqd"}> : () -> ()
    %cst_12 = arith.constant dense<0.000000e+00> : vector<4x8x8xf32>
    %37 = tpu.matmul %36, %24, %cst_12 {dimension_numbers = #tpu.dot_dimension_numbers<[2], [1], [1], [2], [0, 0, 0, 1, 1, 2], [0], [0]>} : vector<4x8x8xf32>, vector<4x8x8xf32>, vector<4x8x8xf32> -> vector<4x8x8xf32>
    "tpu.trace_stop"() : () -> ()
    %38 = vector.shape_cast %37 : vector<4x8x8xf32> to vector<1x4x8x8xf32>
    %39 = tpu.transpose %38, [0, 2, 1, 3] : vector<1x4x8x8xf32> -> vector<1x8x4x8xf32>
    %40 = vector.shape_cast %39 : vector<1x8x4x8xf32> to vector<8x32xf32>
    %c0_13 = arith.constant 0 : index
    %c0_14 = arith.constant 0 : index
    %c0_15 = arith.constant 0 : index
    %41 = vector.load %arg8[%c0_13, %c0_14, %c0_15] : memref<1x8x64xf32, #tpu.memory_space<vmem>>, vector<1x8x64xf32>
    %42 = vector.shape_cast %41 : vector<1x8x64xf32> to vector<8x64xf32>
    %43 = vector.extract_strided_slice %42 {offsets = [0, 0], sizes = [1, 32], strides = [1, 1]} : vector<8x64xf32> to vector<1x32xf32>
    %44 = vector.extract_strided_slice %42 {offsets = [1, 0], sizes = [1, 32], strides = [1, 1]} : vector<8x64xf32> to vector<1x32xf32>
    %45 = vector.extract_strided_slice %42 {offsets = [2, 0], sizes = [1, 32], strides = [1, 1]} : vector<8x64xf32> to vector<1x32xf32>
    %46 = vector.extract_strided_slice %42 {offsets = [3, 0], sizes = [1, 64], strides = [1, 1]} : vector<8x64xf32> to vector<1x64xf32>
    %47 = vector.extract_strided_slice %42 {offsets = [4, 0], sizes = [1, 32], strides = [1, 1]} : vector<8x64xf32> to vector<1x32xf32>
    %48 = vector.extract_strided_slice %42 {offsets = [5, 0], sizes = [1, 32], strides = [1, 1]} : vector<8x64xf32> to vector<1x32xf32>
    %49 = vector.extract_strided_slice %42 {offsets = [6, 0], sizes = [1, 32], strides = [1, 1]} : vector<8x64xf32> to vector<1x32xf32>
    %c0_16 = arith.constant 0 : index
    %c0_17 = arith.constant 0 : index
    %c0_18 = arith.constant 0 : index
    %50 = vector.load %arg5[%c0_16, %c0_17, %c0_18] : memref<1x32x32xf32, #tpu.memory_space<vmem>>, vector<1x32x32xf32>
    %51 = vector.shape_cast %50 : vector<1x32x32xf32> to vector<32x32xf32>
    %cst_19 = arith.constant dense<0.000000e+00> : vector<8x32xf32>
    %52 = tpu.matmul %40, %51, %cst_19 {dimension_numbers = #tpu.dot_dimension_numbers<[1], [0], [0], [1], [0, 0, 1, 1], [], []>} : vector<8x32xf32>, vector<32x32xf32>, vector<8x32xf32> -> vector<8x32xf32>
    %53 = vector.broadcast %43 : vector<1x32xf32> to vector<8x32xf32>
    %54 = arith.addf %52, %53 : vector<8x32xf32>
    %55 = arith.addf %54, %4 : vector<8x32xf32>
    %cst_20 = arith.constant dense<0.000000e+00> : vector<8xf32>
    %56 = vector.multi_reduction <add>, %55, %cst_20 [1] : vector<8x32xf32> to vector<8xf32>
    %57 = vector.shape_cast %56 : vector<8xf32> to vector<8x1xf32>
    %cst_21 = arith.constant 3.200000e+01 : f32
    %58 = vector.broadcast %cst_21 : f32 to vector<8x1xf32>
    %59 = arith.divf %57, %58 : vector<8x1xf32>
    %60 = vector.broadcast %59 : vector<8x1xf32> to vector<8x32xf32>
    %61 = arith.subf %55, %60 : vector<8x32xf32>
    %62 = arith.mulf %61, %61 : vector<8x32xf32>
    %cst_22 = arith.constant dense<0.000000e+00> : vector<8xf32>
    %63 = vector.multi_reduction <add>, %62, %cst_22 [1] : vector<8x32xf32> to vector<8xf32>
    %64 = vector.shape_cast %63 : vector<8xf32> to vector<8x1xf32>
    %cst_23 = arith.constant 3.200000e+01 : f32
    %65 = vector.broadcast %cst_23 : f32 to vector<8x1xf32>
    %66 = arith.divf %64, %65 : vector<8x1xf32>
    %67 = vector.broadcast %59 : vector<8x1xf32> to vector<8x32xf32>
    %68 = arith.subf %55, %67 : vector<8x32xf32>
    %cst_24 = arith.constant 9.99999974E-6 : f32
    %69 = vector.broadcast %cst_24 : f32 to vector<8x1xf32>
    %70 = arith.addf %66, %69 : vector<8x1xf32>
    %71 = math.rsqrt %70 : vector<8x1xf32>
    %72 = vector.broadcast %71 : vector<8x1xf32> to vector<8x32xf32>
    %73 = arith.mulf %68, %72 : vector<8x32xf32>
    %74 = vector.broadcast %44 : vector<1x32xf32> to vector<8x32xf32>
    %75 = arith.mulf %73, %74 : vector<8x32xf32>
    %76 = vector.broadcast %45 : vector<1x32xf32> to vector<8x32xf32>
    %77 = arith.addf %75, %76 : vector<8x32xf32>
    %cst_25 = arith.constant 0.000000e+00 : f32
    %78 = vector.broadcast %cst_25 : f32 to vector<8x32xf32>
    %c0_26 = arith.constant 0 : index
    %c0_27 = arith.constant 0 : index
    %c0_28 = arith.constant 0 : index
    %79 = vector.load %arg6[%c0_26, %c0_27, %c0_28] : memref<1x32x64xf32, #tpu.memory_space<vmem>>, vector<1x32x64xf32>
    %80 = vector.shape_cast %79 : vector<1x32x64xf32> to vector<32x64xf32>
    %cst_29 = arith.constant dense<0.000000e+00> : vector<8x64xf32>
    %81 = tpu.matmul %77, %80, %cst_29 {dimension_numbers = #tpu.dot_dimension_numbers<[1], [0], [0], [1], [0, 0, 1, 1], [], []>} : vector<8x32xf32>, vector<32x64xf32>, vector<8x64xf32> -> vector<8x64xf32>
    %82 = vector.broadcast %46 : vector<1x64xf32> to vector<8x64xf32>
    %83 = arith.addf %81, %82 : vector<8x64xf32>
    %cst_30 = arith.constant 0.000000e+00 : f32
    %84 = vector.broadcast %cst_30 : f32 to vector<8x64xf32>
    %85 = arith.maximumf %83, %84 : vector<8x64xf32>
    %c0_31 = arith.constant 0 : index
    %c0_32 = arith.constant 0 : index
    %c0_33 = arith.constant 0 : index
    %86 = vector.load %arg7[%c0_31, %c0_32, %c0_33] : memref<1x64x32xf32, #tpu.memory_space<vmem>>, vector<1x64x32xf32>
    %87 = vector.shape_cast %86 : vector<1x64x32xf32> to vector<64x32xf32>
    %cst_34 = arith.constant dense<0.000000e+00> : vector<8x32xf32>
    %88 = tpu.matmul %85, %87, %cst_34 {dimension_numbers = #tpu.dot_dimension_numbers<[1], [0], [0], [1], [0, 0, 1, 1], [], []>} : vector<8x64xf32>, vector<64x32xf32>, vector<8x32xf32> -> vector<8x32xf32>
    %89 = arith.addf %78, %88 : vector<8x32xf32>
    %90 = vector.broadcast %47 : vector<1x32xf32> to vector<8x32xf32>
    %91 = arith.addf %89, %90 : vector<8x32xf32>
    %92 = arith.addf %91, %77 : vector<8x32xf32>
    %cst_35 = arith.constant dense<0.000000e+00> : vector<8xf32>
    %93 = vector.multi_reduction <add>, %92, %cst_35 [1] : vector<8x32xf32> to vector<8xf32>
    %94 = vector.shape_cast %93 : vector<8xf32> to vector<8x1xf32>
    %cst_36 = arith.constant 3.200000e+01 : f32
    %95 = vector.broadcast %cst_36 : f32 to vector<8x1xf32>
    %96 = arith.divf %94, %95 : vector<8x1xf32>
    %97 = vector.broadcast %96 : vector<8x1xf32> to vector<8x32xf32>
    %98 = arith.subf %92, %97 : vector<8x32xf32>
    %99 = arith.mulf %98, %98 : vector<8x32xf32>
    %cst_37 = arith.constant dense<0.000000e+00> : vector<8xf32>
    %100 = vector.multi_reduction <add>, %99, %cst_37 [1] : vector<8x32xf32> to vector<8xf32>
    %101 = vector.shape_cast %100 : vector<8xf32> to vector<8x1xf32>
    %cst_38 = arith.constant 3.200000e+01 : f32
    %102 = vector.broadcast %cst_38 : f32 to vector<8x1xf32>
    %103 = arith.divf %101, %102 : vector<8x1xf32>
    %104 = vector.broadcast %96 : vector<8x1xf32> to vector<8x32xf32>
    %105 = arith.subf %92, %104 : vector<8x32xf32>
    %cst_39 = arith.constant 9.99999974E-6 : f32
    %106 = vector.broadcast %cst_39 : f32 to vector<8x1xf32>
    %107 = arith.addf %103, %106 : vector<8x1xf32>
    %108 = math.rsqrt %107 : vector<8x1xf32>
    %109 = vector.broadcast %108 : vector<8x1xf32> to vector<8x32xf32>
    %110 = arith.mulf %105, %109 : vector<8x32xf32>
    %111 = vector.broadcast %48 : vector<1x32xf32> to vector<8x32xf32>
    %112 = arith.mulf %110, %111 : vector<8x32xf32>
    %113 = vector.broadcast %49 : vector<1x32xf32> to vector<8x32xf32>
    %114 = arith.addf %112, %113 : vector<8x32xf32>
    %115 = vector.shape_cast %114 : vector<8x32xf32> to vector<1x8x32xf32>
    %c0_40 = arith.constant 0 : index
    %c0_41 = arith.constant 0 : index
    %c0_42 = arith.constant 0 : index
    %116 = vector.load %arg9[%c0_40, %c0_41, %c0_42] : memref<1x8x32xf32, #tpu.memory_space<vmem>>, vector<1x8x32xf32>
    tpu.vector_store %arg9[%c0_40, %c0_41, %c0_42], %115 {strides = array<i32>} : memref<1x8x32xf32, #tpu.memory_space<vmem>>, vector<1x8x32xf32>,
    return
  }
  func.func @transform_0(%arg0: i32, %arg1: i32) -> (i32, i32, i32) {
    %c0_i32 = arith.constant 0 : i32
    %c0_i32_0 = arith.constant 0 : i32
    %c0_i32_1 = arith.constant 0 : i32
    return %arg0, %c0_i32, %c0_i32_0 : i32, i32, i32
  }
  func.func @transform_1(%arg0: i32, %arg1: i32) -> (i32, i32, i32) {
    %c0_i32 = arith.constant 0 : i32
    %c0_i32_0 = arith.constant 0 : i32
    %c0_i32_1 = arith.constant 0 : i32
    return %arg0, %c0_i32, %c0_i32_0 : i32, i32, i32
  }
  func.func @transform_2(%arg0: i32, %arg1: i32) -> (i32, i32, i32) {
    %c0_i32 = arith.constant 0 : i32
    %c0_i32_0 = arith.constant 0 : i32
    %c0_i32_1 = arith.constant 0 : i32
    return %arg1, %c0_i32, %c0_i32_0 : i32, i32, i32
  }
  func.func @transform_3(%arg0: i32, %arg1: i32) -> (i32, i32, i32) {
    %c0_i32 = arith.constant 0 : i32
    %c0_i32_0 = arith.constant 0 : i32
    %c0_i32_1 = arith.constant 0 : i32
    return %arg1, %c0_i32, %c0_i32_0 : i32, i32, i32
  }
  func.func @transform_4(%arg0: i32, %arg1: i32) -> (i32, i32, i32) {
    %c0_i32 = arith.constant 0 : i32
    %c0_i32_0 = arith.constant 0 : i32
    %c0_i32_1 = arith.constant 0 : i32
    return %arg1, %c0_i32, %c0_i32_0 : i32, i32, i32
  }
  func.func @transform_5(%arg0: i32, %arg1: i32) -> (i32, i32, i32) {
    %c0_i32 = arith.constant 0 : i32
    %c0_i32_0 = arith.constant 0 : i32
    %c0_i32_1 = arith.constant 0 : i32
    return %arg1, %c0_i32, %c0_i32_0 : i32, i32, i32
  }
  func.func @transform_6(%arg0: i32, %arg1: i32) -> (i32, i32, i32) {
    %c0_i32 = arith.constant 0 : i32
    %c0_i32_0 = arith.constant 0 : i32
    %c0_i32_1 = arith.constant 0 : i32
    return %arg1, %c0_i32, %c0_i32_0 : i32, i32, i32
  }
  func.func @transform_7(%arg0: i32, %arg1: i32) -> (i32, i32, i32) {
    %c0_i32 = arith.constant 0 : i32
    %c0_i32_0 = arith.constant 0 : i32
    %c0_i32_1 = arith.constant 0 : i32
    return %arg0, %c0_i32, %c0_i32_0 : i32, i32, i32
  }
}

</mosaic_0001>

<llo_original>
// kernel: tpu_custom_call.1
$region0: #{tpu_custom_call.1}
  #allocation0 [shape = 'u32[]', space=smem, size = 0x4, offset = 0x4, fixed_abs, tag = 'smem constant byte address 0x4 - core index']
  #allocation1 [shape = 'u32[72,128]{1,0:T(1,128)}', space=vmem, size = 0x9000, scoped, tag = 'internal scratch']
  %s0 = inlined_call_operand.hbm [shape: f32[2,1,8], index: 0, kind: input, shape index: {}]
  %s1 = inlined_call_operand.hbm [shape: f32[2,8,32], index: 1, kind: input, shape index: {}]
  %s2 = inlined_call_operand.vmem [shape: f32[2,32,96], index: 2, kind: input, shape index: {}]
  %s3 = inlined_call_operand.vmem [shape: f32[2,32,32], index: 3, kind: input, shape index: {}]
  %s4 = inlined_call_operand.vmem [shape: f32[2,32,64], index: 4, kind: input, shape index: {}]
  %s5 = inlined_call_operand.vmem [shape: f32[2,64,32], index: 5, kind: input, shape index: {}]
  %s6 = inlined_call_operand.hbm [shape: f32[2,8,64], index: 6, kind: input, shape index: {}]
  %s7 = inlined_call_operand.hbm [shape: f32[2,8,32], index: 7, kind: output, shape index: {}]
  %s8 = sld [smem:[#allocation0]]
  $region77: #{tpu_custom_call.1} parent=0
    _
  %s10 = ssub.s32 1, %s8
  %s11 = scalar_select 0, %s10, %s8
  $region1: #{tpu_custom_call.1} parent=0
    #allocation2 [shape = 'u8[1024]{0}', space=vmem, size = 0x400, scoped, tag = 'input window, operand 0']
    #allocation3 [shape = 's32[2]{0}', space=sflag, size = 0x8, scoped, tag = 'scoped memory for tpu_custom_call.1']
    #allocation4 [shape = 's32[2]{0}', space=sflag, size = 0x8, scoped, tag = 'scoped memory for tpu_custom_call.1']
    #allocation5 [shape = 'u8[8192]{0}', space=vmem, size = 0x2000, scoped, tag = 'input window, operand 1']
    #allocation6 [shape = 's32[2]{0}', space=sflag, size = 0x8, scoped, tag = 'scoped memory for tpu_custom_call.1']
    #allocation7 [shape = 'u8[8192]{0}', space=vmem, size = 0x2000, scoped, tag = 'input window, operand 6']
    #allocation8 [shape = 'u8[8192]{0}', space=vmem, size = 0x2000, scoped, tag = 'output window, operand 0']
    %12 = vsyncpa [#allocation3], 0
    %s13 = scalar_lea.sflag [#allocation3], 1
    %14 = vsyncpa %s13, 0
    %15 = vsyncpa [#allocation6], 0
    %s16 = scalar_lea.sflag [#allocation6], 1
    %17 = vsyncpa %s16, 0
    %18 = vsyncpa [#allocation4], 0
    %s19 = scalar_lea.sflag [#allocation4], 1
    %20 = vsyncpa %s19, 0
    loop: start=0, step=1, limit=6
    $region2: #{tpu_custom_call.1} parent=1 // loop_pre_header
      _
    $region3: #{tpu_custom_call.1} parent=1 // loop_header
      %s22 = sphi 0, %s26
      %p23 = scmp.ge.s32.totalorder %s22, 6
      %s29 = sphi 0, %s41
      %s30 = sphi 0, %s37
      %s31 = sphi 0, %s29
      %s32 = sphi 0, %s30
      %s33 = sphi 0, %s31
      %s34 = sphi 0, %s32
      %s44 = sphi 0, %s46
      %s47 = sphi 0, %s44
      %s48 = sphi 0, %s47
      %s64 = sphi 0, %s48
      %s70 = sphi 0, %s72
      %s73 = sphi 0, %s70
      %s74 = sphi 0, %s73
      %s90 = sphi 0, %s74
      %s96 = sphi 0, %s98
      %s99 = sphi 0, %s96
      %s100 = sphi 0, %s99
      %s116 = sphi 0, %s100
      %s122 = sphi 0, %s124
      %s125 = sphi 0, %s122
      %s126 = sphi 0, %s125
      %s142 = sphi 0, %s126
      %s148 = sphi 0, %s150
      %s151 = sphi 0, %s148
      %s152 = sphi 0, %s151
      %s168 = sphi 0, %s152
      %s174 = sphi 0, %s176
      %s177 = sphi 0, %s174
      %s178 = sphi 0, %s177
      %s194 = sphi 0, %s178
      %s200 = sphi 0, %s202
      %s203 = sphi 0, %s200
      %s204 = sphi 0, %s203
      %s220 = sphi 0, %s204
      %s226 = sphi 0, %s228
      %s229 = sphi 0, %s226
      %s230 = sphi 0, %s229
      %s246 = sphi 0, %s230
    $region4: #{tpu_custom_call.1} parent=1 // loop_header_branch
      %25 = sbr.rel (%p23) target = $region8
    $region5: #{tpu_custom_call.1} parent=1 // loop_body
      %s27 = ssub.s32 %s22, 1
      %s28 = ssub.s32 %s22, 2
      %s35 = sadd.s32 1, %s30
      %p36 = scmp.ge.s32.totalorder %s35, 2
      %s37 = scalar_select %p36, 0, %s35
      %s38 = sadd.s32 1, %s29
      %s39 = scalar_select %p36, %s38, %s29
      %p40 = scmp.ge.s32.totalorder %s39, 2
      %s41 = scalar_select %p40, 0, %s39
      %s42 = ssub.s32 %s29, %s41
      %p43 = scmp.eq.s32.totalorder %s42, 0
      %s45 = sadd.s32 %s44, 1
      %s46 = scalar_select %p43, %s44, %s45
      %p49 = pneg %p43
      %p50 = scmp.eq.s32.totalorder %s22, 3
      %p51 = por %p49, %p50
      %p52 = scmp.ne.s32.totalorder %s44, %s47
      %p53 = scmp.eq.s32.totalorder %s22, 0
      %p54 = por %p52, %p53
      %p55 = scmp.ne.s32.totalorder %s44, %s47
      %p56 = scmp.eq.s32.totalorder %s27, 3
      %p57 = por %p55, %p56
      %p58 = scmp.ne.s32.totalorder %s47, %s48
      %p59 = scmp.eq.s32.totalorder %s27, 0
      %p60 = por %p58, %p59
      %p61 = scmp.ne.s32.totalorder %s47, %s48
      %p62 = scmp.eq.s32.totalorder %s28, 3
      %p63 = por %p61, %p62
      %p65 = scmp.ne.s32.totalorder %s48, %s64
      %p66 = scmp.eq.s32.totalorder %s28, 0
      %p67 = por %p65, %p66
      %s68 = ssub.s32 %s29, %s41
      %p69 = scmp.eq.s32.totalorder %s68, 0
      %s71 = sadd.s32 %s70, 1
      %s72 = scalar_select %p69, %s70, %s71
      %p75 = pneg %p69
      %p76 = scmp.eq.s32.totalorder %s22, 3
      %p77 = por %p75, %p76
      %p78 = scmp.ne.s32.totalorder %s70, %s73
      %p79 = scmp.eq.s32.totalorder %s22, 0
      %p80 = por %p78, %p79
      %p81 = scmp.ne.s32.totalorder %s70, %s73
      %p82 = scmp.eq.s32.totalorder %s27, 3
      %p83 = por %p81, %p82
      %p84 = scmp.ne.s32.totalorder %s73, %s74
      %p85 = scmp.eq.s32.totalorder %s27, 0
      %p86 = por %p84, %p85
      %p87 = scmp.ne.s32.totalorder %s73, %s74
      %p88 = scmp.eq.s32.totalorder %s28, 3
      %p89 = por %p87, %p88
      %p91 = scmp.ne.s32.totalorder %s74, %s90
      %p92 = scmp.eq.s32.totalorder %s28, 0
      %p93 = por %p91, %p92
      %s94 = ssub.s32 %s30, %s37
      %p95 = scmp.eq.s32.totalorder %s94, 0
      %s97 = sadd.s32 %s96, 1
      %s98 = scalar_select %p95, %s96, %s97
      %p101 = pneg %p95
      %p102 = scmp.eq.s32.totalorder %s22, 3
      %p103 = por %p101, %p102
      %p104 = scmp.ne.s32.totalorder %s96, %s99
      %p105 = scmp.eq.s32.totalorder %s22, 0
      %p106 = por %p104, %p105
      %p107 = scmp.ne.s32.totalorder %s96, %s99
      %p108 = scmp.eq.s32.totalorder %s27, 3
      %p109 = por %p107, %p108
      %p110 = scmp.ne.s32.totalorder %s99, %s100
      %p111 = scmp.eq.s32.totalorder %s27, 0
      %p112 = por %p110, %p111
      %p113 = scmp.ne.s32.totalorder %s99, %s100
      %p114 = scmp.eq.s32.totalorder %s28, 3
      %p115 = por %p113, %p114
      %p117 = scmp.ne.s32.totalorder %s100, %s116
      %p118 = scmp.eq.s32.totalorder %s28, 0
      %p119 = por %p117, %p118
      %s120 = ssub.s32 %s30, %s37
      %p121 = scmp.eq.s32.totalorder %s120, 0
      %s123 = sadd.s32 %s122, 1
      %s124 = scalar_select %p121, %s122, %s123
      %p127 = pneg %p121
      %p128 = scmp.eq.s32.totalorder %s22, 3
      %p129 = por %p127, %p128
      %p130 = scmp.ne.s32.totalorder %s122, %s125
      %p131 = scmp.eq.s32.totalorder %s22, 0
      %p132 = por %p130, %p131
      %p133 = scmp.ne.s32.totalorder %s122, %s125
      %p134 = scmp.eq.s32.totalorder %s27, 3
      %p135 = por %p133, %p134
      %p136 = scmp.ne.s32.totalorder %s125, %s126
      %p137 = scmp.eq.s32.totalorder %s27, 0
      %p138 = por %p136, %p137
      %p139 = scmp.ne.s32.totalorder %s125, %s126
      %p140 = scmp.eq.s32.totalorder %s28, 3
      %p141 = por %p139, %p140
      %p143 = scmp.ne.s32.totalorder %s126, %s142
      %p144 = scmp.eq.s32.totalorder %s28, 0
      %p145 = por %p143, %p144
      %s146 = ssub.s32 %s30, %s37
      %p147 = scmp.eq.s32.totalorder %s146, 0
      %s149 = sadd.s32 %s148, 1
      %s150 = scalar_select %p147, %s148, %s149
      %p153 = pneg %p147
      %p154 = scmp.eq.s32.totalorder %s22, 3
      %p155 = por %p153, %p154
      %p156 = scmp.ne.s32.totalorder %s148, %s151
      %p157 = scmp.eq.s32.totalorder %s22, 0
      %p158 = por %p156, %p157
      %p159 = scmp.ne.s32.totalorder %s148, %s151
      %p160 = scmp.eq.s32.totalorder %s27, 3
      %p161 = por %p159, %p160
      %p162 = scmp.ne.s32.totalorder %s151, %s152
      %p163 = scmp.eq.s32.totalorder %s27, 0
      %p164 = por %p162, %p163
      %p165 = scmp.ne.s32.totalorder %s151, %s152
      %p166 = scmp.eq.s32.totalorder %s28, 3
      %p167 = por %p165, %p166
      %p169 = scmp.ne.s32.totalorder %s152, %s168
      %p170 = scmp.eq.s32.totalorder %s28, 0
      %p171 = por %p169, %p170
      %s172 = ssub.s32 %s30, %s37
      %p173 = scmp.eq.s32.totalorder %s172, 0
      %s175 = sadd.s32 %s174, 1
      %s176 = scalar_select %p173, %s174, %s175
      %p179 = pneg %p173
      %p180 = scmp.eq.s32.totalorder %s22, 3
      %p181 = por %p179, %p180
      %p182 = scmp.ne.s32.totalorder %s174, %s177
      %p183 = scmp.eq.s32.totalorder %s22, 0
      %p184 = por %p182, %p183
      %p185 = scmp.ne.s32.totalorder %s174, %s177
      %p186 = scmp.eq.s32.totalorder %s27, 3
      %p187 = por %p185, %p186
      %p188 = scmp.ne.s32.totalorder %s177, %s178
      %p189 = scmp.eq.s32.totalorder %s27, 0
      %p190 = por %p188, %p189
      %p191 = scmp.ne.s32.totalorder %s177, %s178
      %p192 = scmp.eq.s32.totalorder %s28, 3
      %p193 = por %p191, %p192
      %p195 = scmp.ne.s32.totalorder %s178, %s194
      %p196 = scmp.eq.s32.totalorder %s28, 0
      %p197 = por %p195, %p196
      %s198 = ssub.s32 %s30, %s37
      %p199 = scmp.eq.s32.totalorder %s198, 0
      %s201 = sadd.s32 %s200, 1
      %s202 = scalar_select %p199, %s200, %s201
      %p205 = pneg %p199
      %p206 = scmp.eq.s32.totalorder %s22, 3
      %p207 = por %p205, %p206
      %p208 = scmp.ne.s32.totalorder %s200, %s203
      %p209 = scmp.eq.s32.totalorder %s22, 0
      %p210 = por %p208, %p209
      %p211 = scmp.ne.s32.totalorder %s200, %s203
      %p212 = scmp.eq.s32.totalorder %s27, 3
      %p213 = por %p211, %p212
      %p214 = scmp.ne.s32.totalorder %s203, %s204
      %p215 = scmp.eq.s32.totalorder %s27, 0
      %p216 = por %p214, %p215
      %p217 = scmp.ne.s32.totalorder %s203, %s204
      %p218 = scmp.eq.s32.totalorder %s28, 3
      %p219 = por %p217, %p218
      %p221 = scmp.ne.s32.totalorder %s204, %s220
      %p222 = scmp.eq.s32.totalorder %s28, 0
      %p223 = por %p221, %p222
      %s224 = ssub.s32 %s29, %s41
      %p225 = scmp.eq.s32.totalorder %s224, 0
      %s227 = sadd.s32 %s226, 1
      %s228 = scalar_select %p225, %s226, %s227
      %p231 = pneg %p225
      %p232 = scmp.eq.s32.totalorder %s22, 3
      %p233 = por %p231, %p232
      %p234 = scmp.ne.s32.totalorder %s226, %s229
      %p235 = scmp.eq.s32.totalorder %s22, 0
      %p236 = por %p234, %p235
      %p237 = scmp.ne.s32.totalorder %s226, %s229
      %p238 = scmp.eq.s32.totalorder %s27, 3
      %p239 = por %p237, %p238
      %p240 = scmp.ne.s32.totalorder %s229, %s230
      %p241 = scmp.eq.s32.totalorder %s27, 0
      %p242 = por %p240, %p241
      %p243 = scmp.ne.s32.totalorder %s229, %s230
      %p244 = scmp.eq.s32.totalorder %s28, 3
      %p245 = por %p243, %p244
      %p247 = scmp.ne.s32.totalorder %s230, %s246
      %p248 = scmp.eq.s32.totalorder %s28, 0
      %p249 = por %p247, %p248
      %p250 = scmp.le.s32.totalorder 1, %s22
      %p251 = scmp.lt.s32.totalorder %s22, 5
      %p252 = pnand %p250, %p251
      %p253 = pneg %p252
      // Predicated region
      $region9: #{tpu_custom_call.1} parent=5 // pred_check
        _
      $region10: #{tpu_custom_call.1} parent=5 // pred_check_branch
        %255 = sbr.rel (%p252) target = $region12
      $region11: #{tpu_custom_call.1} parent=5 // pred_region
        %s256 = ssub.s32 %s22, 1
      $region12: #{tpu_custom_call.1} parent=5 // pred_fallthru
        _
      %p257 = scmp.lt.s32.totalorder %s22, 4
      // Predicated region
      $region13: #{tpu_custom_call.1} parent=5 // pred_check
        %p258 = pneg %p257
      $region14: #{tpu_custom_call.1} parent=5 // pred_check_branch
        %260 = sbr.rel (%p258) target = $region16
      $region15: #{tpu_custom_call.1} parent=5 // pred_region
        // Predicated region
        $region17: #{tpu_custom_call.1} parent=15 // pred_check
          %p261 = pneg %p54
        $region18: #{tpu_custom_call.1} parent=15 // pred_check_branch
          %263 = sbr.rel (%p261) target = $region20
        $region19: #{tpu_custom_call.1} parent=15 // pred_region
          %s264 = sand.u32 %s44, 1
          %s265 = scalar_lea.sflag [#allocation3], %s264
          %s266 = sand.u32 %s44, 1
          %s267 = scalar_lea.vmem [#allocation2], %s266
          %269 = vsyncadd %s265, 0
          %s270 = scalar_lea.hbm %s0, %s29
          %s272 = sshll.u32 %s270, 4
          %s273 = int_to_ptr.hbm [resolvable:$true] %s272
          %s274 = sshll.u32 %s267, 4
          %s275 = int_to_ptr.vmem [resolvable:$true] %s274
          %277 = dma.hbm_to_vmem [thread:$0]  %s273, 16, %s275, %s265
        $region20: #{tpu_custom_call.1} parent=15 // pred_fallthru
          _
        // Predicated region
        $region21: #{tpu_custom_call.1} parent=15 // pred_check
          %p278 = pneg %p80
        $region22: #{tpu_custom_call.1} parent=15 // pred_check_branch
          %280 = sbr.rel (%p278) target = $region24
        $region23: #{tpu_custom_call.1} parent=15 // pred_region
          %s281 = sand.u32 %s22, 1
          %s282 = scalar_lea.sflag [#allocation6], %s281
          %s283 = sand.u32 %s70, 1
          %s284 = smul.addr %s283, 8
          %s285 = scalar_lea.vmem [#allocation5], %s284
          %287 = vsyncadd %s282, 0
          %s288 = smul.addr %s29, 8
          %s289 = scalar_lea.hbm %s1, %s288
          %s291 = sshll.u32 %s289, 4
          %s292 = int_to_ptr.hbm [resolvable:$true] %s291
          %s293 = sshll.u32 %s285, 4
          %s294 = int_to_ptr.vmem [resolvable:$true] %s293
          %296 = dma.hbm_to_vmem [thread:$0]  %s292, 128, %s294, %s282
        $region24: #{tpu_custom_call.1} parent=15 // pred_fallthru
          _
        // Predicated region
        $region25: #{tpu_custom_call.1} parent=15 // pred_check
          %p297 = pneg %p106
        $region26: #{tpu_custom_call.1} parent=15 // pred_check_branch
          %299 = sbr.rel (%p297) target = $region28
        $region27: #{tpu_custom_call.1} parent=15 // pred_region
          %p300 = scmp.lt.s32.totalorder %s30, 1
          %s301 = scalar_select %p300, %s30, 1
          %s302 = smul.addr %s301, 4
          %s303 = smul.addr %s302, 8
          %s304 = scalar_lea.vmem %s2, %s303
        $region28: #{tpu_custom_call.1} parent=15 // pred_fallthru
          _
        // Predicated region
        $region29: #{tpu_custom_call.1} parent=15 // pred_check
          %p305 = pneg %p132
        $region30: #{tpu_custom_call.1} parent=15 // pred_check_branch
          %307 = sbr.rel (%p305) target = $region32
        $region31: #{tpu_custom_call.1} parent=15 // pred_region
          %p308 = scmp.lt.s32.totalorder %s30, 1
          %s309 = scalar_select %p308, %s30, 1
          %s310 = smul.addr %s309, 4
          %s311 = smul.addr %s310, 8
          %s312 = scalar_lea.vmem %s3, %s311
        $region32: #{tpu_custom_call.1} parent=15 // pred_fallthru
          _
        // Predicated region
        $region33: #{tpu_custom_call.1} parent=15 // pred_check
          %p313 = pneg %p158
        $region34: #{tpu_custom_call.1} parent=15 // pred_check_branch
          %315 = sbr.rel (%p313) target = $region36
        $region35: #{tpu_custom_call.1} parent=15 // pred_region
          %p316 = scmp.lt.s32.totalorder %s30, 1
          %s317 = scalar_select %p316, %s30, 1
          %s318 = smul.addr %s317, 4
          %s319 = smul.addr %s318, 8
          %s320 = scalar_lea.vmem %s4, %s319
        $region36: #{tpu_custom_call.1} parent=15 // pred_fallthru
          _
        // Predicated region
        $region37: #{tpu_custom_call.1} parent=15 // pred_check
          %p321 = pneg %p184
        $region38: #{tpu_custom_call.1} parent=15 // pred_check_branch
          %323 = sbr.rel (%p321) target = $region40
        $region39: #{tpu_custom_call.1} parent=15 // pred_region
          %p324 = scmp.lt.s32.totalorder %s30, 1
          %s325 = scalar_select %p324, %s30, 1
          %s326 = smul.addr %s325, 8
          %s327 = smul.addr %s326, 8
          %s328 = scalar_lea.vmem %s5, %s327
        $region40: #{tpu_custom_call.1} parent=15 // pred_fallthru
          _
        // Predicated region
        $region41: #{tpu_custom_call.1} parent=15 // pred_check
          %p329 = pneg %p210
        $region42: #{tpu_custom_call.1} parent=15 // pred_check_branch
          %331 = sbr.rel (%p329) target = $region44
        $region43: #{tpu_custom_call.1} parent=15 // pred_region
          %s332 = sand.u32 %s22, 1
          %s333 = scalar_lea.sflag [#allocation6], %s332
          %s334 = sand.u32 %s200, 1
          %s335 = smul.addr %s334, 8
          %s336 = scalar_lea.vmem [#allocation7], %s335
          %338 = vsyncadd %s333, 0
          %s339 = smul.addr %s30, 8
          %s340 = scalar_lea.hbm %s6, %s339
          %s342 = sshll.u32 %s340, 4
          %s343 = int_to_ptr.hbm [resolvable:$true] %s342
          %s344 = sshll.u32 %s336, 4
          %s345 = int_to_ptr.vmem [resolvable:$true] %s344
          %347 = dma.hbm_to_vmem [thread:$0]  %s343, 128, %s345, %s333
        $region44: #{tpu_custom_call.1} parent=15 // pred_fallthru
          _
      $region16: #{tpu_custom_call.1} parent=5 // pred_fallthru
        _
      %p348 = scmp.le.s32.totalorder 1, %s22
      %p349 = scmp.lt.s32.totalorder %s22, 5
      %p350 = pnand %p348, %p349
      %p351 = pneg %p350
      // Predicated region
      $region45: #{tpu_custom_call.1} parent=5 // pred_check
        _
      $region46: #{tpu_custom_call.1} parent=5 // pred_check_branch
        %353 = sbr.rel (%p350) target = $region48
      $region47: #{tpu_custom_call.1} parent=5 // pred_region
        %s354 = ssub.s32 %s22, 1
        %s355 = sand.u32 %s47, 1
        %s356 = scalar_lea.sflag [#allocation3], %s355
        %s357 = sand.u32 %s47, 1
        %s358 = scalar_lea.vmem [#allocation2], %s357
        // Predicated region
        $region49: #{tpu_custom_call.1} parent=47 // pred_check
          %p359 = pneg %p60
        $region50: #{tpu_custom_call.1} parent=47 // pred_check_branch
          %361 = sbr.rel (%p359) target = $region52
        $region51: #{tpu_custom_call.1} parent=47 // pred_region
          %363 = dma.done %s356, 16
        $region52: #{tpu_custom_call.1} parent=47 // pred_fallthru
          _
        %s364 = sand.u32 %s27, 1
        %s365 = scalar_lea.sflag [#allocation6], %s364
        %s366 = sand.u32 %s73, 1
        %s367 = smul.addr %s366, 8
        %s368 = scalar_lea.vmem [#allocation5], %s367
        // Predicated region
        $region53: #{tpu_custom_call.1} parent=47 // pred_check
          %p369 = pneg %p86
        $region54: #{tpu_custom_call.1} parent=47 // pred_check_branch
          %371 = sbr.rel (%p369) target = $region56
        $region55: #{tpu_custom_call.1} parent=47 // pred_region
          %373 = dma.done %s365, 128
        $region56: #{tpu_custom_call.1} parent=47 // pred_fallthru
          _
        %s374 = sand.u32 %s27, 1
        %s375 = scalar_lea.sflag [#allocation6], %s374
        %s376 = sand.u32 %s203, 1
        %s377 = smul.addr %s376, 8
        %s378 = scalar_lea.vmem [#allocation7], %s377
        // Predicated region
        $region57: #{tpu_custom_call.1} parent=47 // pred_check
          %p379 = pneg %p216
        $region58: #{tpu_custom_call.1} parent=47 // pred_check_branch
          %381 = sbr.rel (%p379) target = $region60
        $region59: #{tpu_custom_call.1} parent=47 // pred_region
          %383 = dma.done %s375, 128
        $region60: #{tpu_custom_call.1} parent=47 // pred_fallthru
          _
        %s384 = sand.u32 %s47, 1
        %s385 = scalar_lea.sflag [#allocation3], %s384
        %s386 = sand.u32 %s47, 1
        %s387 = scalar_lea.vmem [#allocation2], %s386
        %p388 = pneg %p60
        %p389 = pneg %p57
        %s390 = sand.u32 %s27, 1
        %s391 = scalar_lea.sflag [#allocation6], %s390
        %s392 = sand.u32 %s73, 1
        %s393 = smul.addr %s392, 8
        %s394 = scalar_lea.vmem [#allocation5], %s393
        %p395 = pneg %p86
        %p396 = pneg %p83
        %p397 = scmp.lt.s32.totalorder %s32, 1
        %s398 = scalar_select %p397, %s32, 1
        %s399 = smul.addr %s398, 4
        %s400 = smul.addr %s399, 8
        %s401 = scalar_lea.vmem %s2, %s400
        %p402 = pneg %p112
        %p403 = pneg %p109
        %p404 = scmp.lt.s32.totalorder %s32, 1
        %s405 = scalar_select %p404, %s32, 1
        %s406 = smul.addr %s405, 4
        %s407 = smul.addr %s406, 8
        %s408 = scalar_lea.vmem %s3, %s407
        %p409 = pneg %p138
        %p410 = pneg %p135
        %p411 = scmp.lt.s32.totalorder %s32, 1
        %s412 = scalar_select %p411, %s32, 1
        %s413 = smul.addr %s412, 4
        %s414 = smul.addr %s413, 8
        %s415 = scalar_lea.vmem %s4, %s414
        %p416 = pneg %p164
        %p417 = pneg %p161
        %p418 = scmp.lt.s32.totalorder %s32, 1
        %s419 = scalar_select %p418, %s32, 1
        %s420 = smul.addr %s419, 8
        %s421 = smul.addr %s420, 8
        %s422 = scalar_lea.vmem %s5, %s421
        %p423 = pneg %p190
        %p424 = pneg %p187
        %s425 = sand.u32 %s27, 1
        %s426 = scalar_lea.sflag [#allocation6], %s425
        %s427 = sand.u32 %s203, 1
        %s428 = smul.addr %s427, 8
        %s429 = scalar_lea.vmem [#allocation7], %s428
        %p430 = pneg %p216
        %p431 = pneg %p213
        %p432 = pneg %p242
        %p433 = pneg %p239
        %s434 = sand.u32 %s229, 1
        %s435 = scalar_lea.sflag [#allocation4], %s434
        %s436 = sand.u32 %s229, 1
        %s437 = smul.addr %s436, 8
        %s438 = scalar_lea.vmem [#allocation8], %s437
        %p439 = scmp.lt.s32.totalorder %s32, 1
        %s440 = scalar_select %p439, %s32, 1
        %s441 = smul.addr %s440, 4
        %s442 = smul.addr %s441, 8
        %s443 = scalar_lea.vmem %s2, %s442
        %p444 = scmp.lt.s32.totalorder %s32, 1
        %s445 = scalar_select %p444, %s32, 1
        %s446 = smul.addr %s445, 4
        %s447 = smul.addr %s446, 8
        %s448 = scalar_lea.vmem %s3, %s447
        %p449 = scmp.lt.s32.totalorder %s32, 1
        %s450 = scalar_select %p449, %s32, 1
        %s451 = smul.addr %s450, 4
        %s452 = smul.addr %s451, 8
        %s453 = scalar_lea.vmem %s4, %s452
        %p454 = scmp.lt.s32.totalorder %s32, 1
        %s455 = scalar_select %p454, %s32, 1
        %s456 = smul.addr %s455, 8
        %s457 = smul.addr %s456, 8
        %s458 = scalar_lea.vmem %s5, %s457
        %p459 = scmp.eq.s32.totalorder %s32, 0
        // Predicated region
        $region61: #{tpu_custom_call.1} parent=47 // pred_check
          %p460 = pneg %p459
        $region62: #{tpu_custom_call.1} parent=47 // pred_check_branch
          %462 = sbr.rel (%p460) target = $region64
        $region63: #{tpu_custom_call.1} parent=47 // pred_region
          %v463 = vld [vmem:[%s368] sm:$0xff]
          %vm464 = vcmask 261120
          %465 = vst.msk [vmem:[%s438] sm:$0xff] %vm464, %v463
        $region64: #{tpu_custom_call.1} parent=47 // pred_fallthru
          _
        %v466 = vld [vmem:[%s438] sm:$0xff]
        %v467 = vld [vmem:[%s358] sm:$0x1]
        %v468 = vld [vmem:[%s443] sm:$0xff]
        %v469 = vld [vmem:[%s443 + $0x8] sm:$0xff]
        %v470 = vld [vmem:[%s443 + $0x10] sm:$0xff]
        %v471 = vld [vmem:[%s443 + $0x18] sm:$0xff]
        %vm472 = vcmask 261120
        %v474 = vsel %vm472, %v466, 0
        %476 = vmatpush.msra.mxu0 0.0
        %477 = vmatpush.msra.mxu0 0.0
        %478 = vmatpush.msra.mxu0 0.0
        %479 = vmatpush.msra.mxu0 0.0
        %480 = vmatpush.msra.mxu0 0.0
        %481 = vmatpush.msra.mxu0 0.0
        %482 = vmatpush.msra.mxu0 0.0
        %483 = vmatpush.msra.mxu0 0.0
        %484 = vmatpush.msra.mxu0 0.0
        %485 = vmatpush.msra.mxu0 0.0
        %486 = vmatpush.msra.mxu0 0.0
        %487 = vmatpush.msra.mxu0 0.0
        %488 = vmatpush.msra.mxu0 %v471
        %489 = vmatpush.msra.mxu0 %v470
        %490 = vmatpush.msra.mxu0 %v469
        %491 = vmatpush.msra.mxu0 %v468
        %492 = vmatmul.f32.gmra.mxu0 %v474
        %v493 = vpop.f32.mrf.mxu0
        %v494 = vadd.f32 0.0, %v493
        %495 = vdwg.mxu0
        %497 = vrot.lane.b32.xlu0 %v494, 120
        %v498 = vpop.permute.xlu0 %497
        %500 = vrot.lane.b32.xlu0 %v494, 112
        %v501 = vpop.permute.xlu0 %500
        %503 = vrot.lane.b32.xlu0 %v494, 104
        %v504 = vpop.permute.xlu0 %503
        %v506 = vrot.slane %v501, 4
        %vm507 = vcmask 1047556
        %v508 = vsel %vm507, %v506, %v494
        %v509 = vrot.slane %v494, 4
        %v510 = vsel %vm507, %v501, %v509
        %v512 = vunpack.c.l.s4 1983009808
        %v513 = vunpack.c.0.s8 %v512
        %v514 = vperm.slane %v508, %v513
        %v516 = vunpack.c.l.s4 1983009808
        %v517 = vunpack.c.0.s8 %v516
        %v518 = vperm.slane %v510, %v517
        %v519 = vrot.slane %v504, 4
        %v520 = vsel %vm507, %v519, %v498
        %v521 = vrot.slane %v498, 4
        %v522 = vsel %vm507, %v504, %v521
        %v524 = vunpack.c.l.s4 1983009808
        %v525 = vunpack.c.0.s8 %v524
        %v526 = vperm.slane %v520, %v525
        %v528 = vunpack.c.l.s4 1983009808
        %v529 = vunpack.c.0.s8 %v528
        %v530 = vperm.slane %v522, %v529
        %v531 = vrot.slane %v526, 4
        %v532 = vsel %vm507, %v531, %v514
        %v533 = vrot.slane %v514, 4
        %v534 = vsel %vm507, %v526, %v533
        %v536 = vunpack.c.l.s4 1934713408
        %v537 = vunpack.c.0.s8 %v536
        %v538 = vperm.slane %v532, %v537
        %v540 = vunpack.c.l.s4 1934713408
        %v541 = vunpack.c.0.s8 %v540
        %v542 = vperm.slane %v534, %v541
        %v543 = vrot.slane %v530, 4
        %v544 = vsel %vm507, %v543, %v518
        %v545 = vrot.slane %v518, 4
        %v546 = vsel %vm507, %v530, %v545
        %v548 = vunpack.c.l.s4 1934713408
        %v549 = vunpack.c.0.s8 %v548
        %v550 = vperm.slane %v544, %v549
        %v552 = vunpack.c.l.s4 1934713408
        %v553 = vunpack.c.0.s8 %v552
        %v554 = vperm.slane %v546, %v553
        %v555 = vrot.slane %v538, 4
        %v556 = vsel %vm507, 0.0, %v555
        %v557 = vrot.slane %v542, 4
        %v558 = vsel %vm507, 0.0, %v557
        %v559 = vrot.slane %v550, 4
        %v560 = vsel %vm507, 0.0, %v559
        %v561 = vrot.slane %v554, 4
        %v562 = vsel %vm507, 0.0, %v561
        %v563 = vsel %vm507, %v557, %v538
        %v565 = vunpack.c.l.s4 1983009808
        %v566 = vunpack.c.0.s8 %v565
        %v567 = vperm.slane %v563, %v566
        %v568 = vrot.slane %v558, 4
        %v569 = vsel %vm507, %v568, %v556
        %v571 = vunpack.c.l.s4 1983009808
        %v572 = vunpack.c.0.s8 %v571
        %v573 = vperm.slane %v569, %v572
        %v574 = vsel %vm507, %v561, %v550
        %v576 = vunpack.c.l.s4 1983009808
        %v577 = vunpack.c.0.s8 %v576
        %v578 = vperm.slane %v574, %v577
        %v579 = vrot.slane %v562, 4
        %v580 = vsel %vm507, %v579, %v560
        %v582 = vunpack.c.l.s4 1983009808
        %v583 = vunpack.c.0.s8 %v582
        %v584 = vperm.slane %v580, %v583
        %v585 = vrot.slane %v573, 4
        %v586 = vsel %vm507, %v585, %v567
        %v587 = vrot.slane %v567, 4
        %v588 = vsel %vm507, %v573, %v587
        %v590 = vunpack.c.l.s4 1934713408
        %v591 = vunpack.c.0.s8 %v590
        %v592 = vperm.slane %v586, %v591
        %v594 = vunpack.c.l.s4 1934713408
        %v595 = vunpack.c.0.s8 %v594
        %v596 = vperm.slane %v588, %v595
        %v597 = vrot.slane %v584, 4
        %v598 = vsel %vm507, %v597, %v578
        %v599 = vrot.slane %v578, 4
        %v600 = vsel %vm507, %v584, %v599
        %v602 = vunpack.c.l.s4 1934713408
        %v603 = vunpack.c.0.s8 %v602
        %v604 = vperm.slane %v598, %v603
        %v606 = vunpack.c.l.s4 1934713408
        %v607 = vunpack.c.0.s8 %v606
        %v608 = vperm.slane %v600, %v607
        %v609 = vrot.slane %v604, 4
        %v610 = vsel %vm507, %v609, %v592
        %v611 = vrot.slane %v592, 4
        %v612 = vsel %vm507, %v604, %v611
        %v613 = vrot.slane %v608, 4
        %v614 = vsel %vm507, %v613, %v596
        %v615 = vrot.slane %v596, 4
        %v616 = vsel %vm507, %v608, %v615
        %617 = vrot.lane.b32.xlu0 %v494, 96
        %v618 = vpop.permute.xlu0 %617
        %619 = vrot.lane.b32.xlu0 %v498, 96
        %v620 = vpop.permute.xlu0 %619
        %621 = vrot.lane.b32.xlu0 %v501, 96
        %v622 = vpop.permute.xlu0 %621
        %623 = vrot.lane.b32.xlu0 %v504, 96
        %v624 = vpop.permute.xlu0 %623
        %v629 = vrot.slane %v622, 4
        %v630 = vsel %vm507, %v629, %v618
        %v631 = vrot.slane %v618, 4
        %v632 = vsel %vm507, %v622, %v631
        %v634 = vunpack.c.l.s4 1983009808
        %v635 = vunpack.c.0.s8 %v634
        %v636 = vperm.slane %v630, %v635
        %v638 = vunpack.c.l.s4 1983009808
        %v639 = vunpack.c.0.s8 %v638
        %v640 = vperm.slane %v632, %v639
        %v641 = vrot.slane %v624, 4
        %v642 = vsel %vm507, %v641, %v620
        %v643 = vrot.slane %v620, 4
        %v644 = vsel %vm507, %v624, %v643
        %v646 = vunpack.c.l.s4 1983009808
        %v647 = vunpack.c.0.s8 %v646
        %v648 = vperm.slane %v642, %v647
        %v650 = vunpack.c.l.s4 1983009808
        %v651 = vunpack.c.0.s8 %v650
        %v652 = vperm.slane %v644, %v651
        %v653 = vrot.slane %v648, 4
        %v654 = vsel %vm507, %v653, %v636
        %v655 = vrot.slane %v636, 4
        %v656 = vsel %vm507, %v648, %v655
        %v658 = vunpack.c.l.s4 1934713408
        %v659 = vunpack.c.0.s8 %v658
        %v660 = vperm.slane %v654, %v659
        %v662 = vunpack.c.l.s4 1934713408
        %v663 = vunpack.c.0.s8 %v662
        %v664 = vperm.slane %v656, %v663
        %v665 = vrot.slane %v652, 4
        %v666 = vsel %vm507, %v665, %v640
        %v667 = vrot.slane %v640, 4
        %v668 = vsel %vm507, %v652, %v667
        %v670 = vunpack.c.l.s4 1934713408
        %v671 = vunpack.c.0.s8 %v670
        %v672 = vperm.slane %v666, %v671
        %v674 = vunpack.c.l.s4 1934713408
        %v675 = vunpack.c.0.s8 %v674
        %v676 = vperm.slane %v668, %v675
        %v677 = vrot.slane %v660, 4
        %v678 = vsel %vm507, 0.0, %v677
        %v679 = vrot.slane %v664, 4
        %v680 = vsel %vm507, 0.0, %v679
        %v681 = vrot.slane %v672, 4
        %v682 = vsel %vm507, 0.0, %v681
        %v683 = vrot.slane %v676, 4
        %v684 = vsel %vm507, 0.0, %v683
        %v685 = vsel %vm507, %v679, %v660
        %v687 = vunpack.c.l.s4 1983009808
        %v688 = vunpack.c.0.s8 %v687
        %v689 = vperm.slane %v685, %v688
        %v690 = vrot.slane %v680, 4
        %v691 = vsel %vm507, %v690, %v678
        %v693 = vunpack.c.l.s4 1983009808
        %v694 = vunpack.c.0.s8 %v693
        %v695 = vperm.slane %v691, %v694
        %v696 = vsel %vm507, %v683, %v672
        %v698 = vunpack.c.l.s4 1983009808
        %v699 = vunpack.c.0.s8 %v698
        %v700 = vperm.slane %v696, %v699
        %v701 = vrot.slane %v684, 4
        %v702 = vsel %vm507, %v701, %v682
        %v704 = vunpack.c.l.s4 1983009808
        %v705 = vunpack.c.0.s8 %v704
        %v706 = vperm.slane %v702, %v705
        %v707 = vrot.slane %v695, 4
        %v708 = vsel %vm507, %v707, %v689
        %v709 = vrot.slane %v689, 4
        %v710 = vsel %vm507, %v695, %v709
        %v712 = vunpack.c.l.s4 1934713408
        %v713 = vunpack.c.0.s8 %v712
        %v714 = vperm.slane %v708, %v713
        %v716 = vunpack.c.l.s4 1934713408
        %v717 = vunpack.c.0.s8 %v716
        %v718 = vperm.slane %v710, %v717
        %v719 = vrot.slane %v706, 4
        %v720 = vsel %vm507, %v719, %v700
        %v721 = vrot.slane %v700, 4
        %v722 = vsel %vm507, %v706, %v721
        %v724 = vunpack.c.l.s4 1934713408
        %v725 = vunpack.c.0.s8 %v724
        %v726 = vperm.slane %v720, %v725
        %v728 = vunpack.c.l.s4 1934713408
        %v729 = vunpack.c.0.s8 %v728
        %v730 = vperm.slane %v722, %v729
        %v731 = vrot.slane %v726, 4
        %v732 = vsel %vm507, %v731, %v714
        %v733 = vrot.slane %v714, 4
        %v734 = vsel %vm507, %v726, %v733
        %v735 = vrot.slane %v730, 4
        %v736 = vsel %vm507, %v735, %v718
        %v737 = vrot.slane %v718, 4
        %v738 = vsel %vm507, %v730, %v737
        %739 = vrot.lane.b32.xlu0 %v494, 64
        %v740 = vpop.permute.xlu0 %739
        %741 = vrot.lane.b32.xlu0 %v498, 64
        %v742 = vpop.permute.xlu0 %741
        %743 = vrot.lane.b32.xlu0 %v501, 64
        %v744 = vpop.permute.xlu0 %743
        %745 = vrot.lane.b32.xlu0 %v504, 64
        %v746 = vpop.permute.xlu0 %745
        %v751 = vrot.slane %v744, 4
        %v752 = vsel %vm507, %v751, %v740
        %v753 = vrot.slane %v740, 4
        %v754 = vsel %vm507, %v744, %v753
        %v756 = vunpack.c.l.s4 1983009808
        %v757 = vunpack.c.0.s8 %v756
        %v758 = vperm.slane %v752, %v757
        %v760 = vunpack.c.l.s4 1983009808
        %v761 = vunpack.c.0.s8 %v760
        %v762 = vperm.slane %v754, %v761
        %v763 = vrot.slane %v746, 4
        %v764 = vsel %vm507, %v763, %v742
        %v765 = vrot.slane %v742, 4
        %v766 = vsel %vm507, %v746, %v765
        %v768 = vunpack.c.l.s4 1983009808
        %v769 = vunpack.c.0.s8 %v768
        %v770 = vperm.slane %v764, %v769
        %v772 = vunpack.c.l.s4 1983009808
        %v773 = vunpack.c.0.s8 %v772
        %v774 = vperm.slane %v766, %v773
        %v775 = vrot.slane %v770, 4
        %v776 = vsel %vm507, %v775, %v758
        %v777 = vrot.slane %v758, 4
        %v778 = vsel %vm507, %v770, %v777
        %v780 = vunpack.c.l.s4 1934713408
        %v781 = vunpack.c.0.s8 %v780
        %v782 = vperm.slane %v776, %v781
        %v784 = vunpack.c.l.s4 1934713408
        %v785 = vunpack.c.0.s8 %v784
        %v786 = vperm.slane %v778, %v785
        %v787 = vrot.slane %v774, 4
        %v788 = vsel %vm507, %v787, %v762
        %v789 = vrot.slane %v762, 4
        %v790 = vsel %vm507, %v774, %v789
        %v792 = vunpack.c.l.s4 1934713408
        %v793 = vunpack.c.0.s8 %v792
        %v794 = vperm.slane %v788, %v793
        %v796 = vunpack.c.l.s4 1934713408
        %v797 = vunpack.c.0.s8 %v796
        %v798 = vperm.slane %v790, %v797
        %v799 = vrot.slane %v782, 4
        %v800 = vsel %vm507, 0.0, %v799
        %v801 = vrot.slane %v786, 4
        %v802 = vsel %vm507, 0.0, %v801
        %v803 = vrot.slane %v794, 4
        %v804 = vsel %vm507, 0.0, %v803
        %v805 = vrot.slane %v798, 4
        %v806 = vsel %vm507, 0.0, %v805
        %v807 = vsel %vm507, %v801, %v782
        %v809 = vunpack.c.l.s4 1983009808
        %v810 = vunpack.c.0.s8 %v809
        %v811 = vperm.slane %v807, %v810
        %v812 = vrot.slane %v802, 4
        %v813 = vsel %vm507, %v812, %v800
        %v815 = vunpack.c.l.s4 1983009808
        %v816 = vunpack.c.0.s8 %v815
        %v817 = vperm.slane %v813, %v816
        %v818 = vsel %vm507, %v805, %v794
        %v820 = vunpack.c.l.s4 1983009808
        %v821 = vunpack.c.0.s8 %v820
        %v822 = vperm.slane %v818, %v821
        %v823 = vrot.slane %v806, 4
        %v824 = vsel %vm507, %v823, %v804
        %v826 = vunpack.c.l.s4 1983009808
        %v827 = vunpack.c.0.s8 %v826
        %v828 = vperm.slane %v824, %v827
        %v829 = vrot.slane %v817, 4
        %v830 = vsel %vm507, %v829, %v811
        %v831 = vrot.slane %v811, 4
        %v832 = vsel %vm507, %v817, %v831
        %v834 = vunpack.c.l.s4 1934713408
        %v835 = vunpack.c.0.s8 %v834
        %v836 = vperm.slane %v830, %v835
        %v838 = vunpack.c.l.s4 1934713408
        %v839 = vunpack.c.0.s8 %v838
        %v840 = vperm.slane %v832, %v839
        %v841 = vrot.slane %v828, 4
        %v842 = vsel %vm507, %v841, %v822
        %v843 = vrot.slane %v822, 4
        %v844 = vsel %vm507, %v828, %v843
        %v846 = vunpack.c.l.s4 1934713408
        %v847 = vunpack.c.0.s8 %v846
        %v848 = vperm.slane %v842, %v847
        %v850 = vunpack.c.l.s4 1934713408
        %v851 = vunpack.c.0.s8 %v850
        %v852 = vperm.slane %v844, %v851
        %v853 = vrot.slane %v848, 4
        %v854 = vsel %vm507, %v853, %v836
        %v855 = vrot.slane %v836, 4
        %v856 = vsel %vm507, %v848, %v855
        %v857 = vrot.slane %v852, 4
        %v858 = vsel %vm507, %v857, %v840
        %v859 = vrot.slane %v840, 4
        %v860 = vsel %vm507, %v852, %v859
        %v862 = vperm.slane %v467, 0
        %vm864 = vcmask 64512
        %v866 = vsel %vm864, %v610, 0
        %v869 = vsel %vm864, %v732, 0
        %871 = vmatpush.xpose.msra.mxu0 0.0
        %872 = vmatpush.xpose.msra.mxu0 0.0
        %873 = vmatpush.xpose.msra.mxu0 0.0
        %874 = vmatpush.xpose.msra.mxu0 0.0
        %875 = vmatpush.xpose.msra.mxu0 0.0
        %876 = vmatpush.xpose.msra.mxu0 0.0
        %877 = vmatpush.xpose.msra.mxu0 0.0
        %878 = vmatpush.xpose.msra.mxu0 0.0
        %879 = vmatpush.xpose.msra.mxu0 0.0
        %880 = vmatpush.xpose.msra.mxu0 0.0
        %881 = vmatpush.xpose.msra.mxu0 0.0
        %882 = vmatpush.xpose.msra.mxu0 0.0
        %883 = vmatpush.xpose.msra.mxu0 0.0
        %884 = vmatpush.xpose.msra.mxu0 0.0
        %885 = vmatpush.xpose.msra.mxu0 0.0
        %886 = vmatpush.xpose.msra.mxu0 %v869
        %887 = vmatmul.f32.gmra.mxu0 %v866
        %v888 = vpop.f32.mrf.mxu0
        %v889 = vadd.f32 %v862, %v888
        %890 = vdwg.mxu0
        %v892 = vsel %vm864, %v612, 0
        %v895 = vsel %vm864, %v734, 0
        %897 = vmatpush.xpose.msra.mxu0 0.0
        %898 = vmatpush.xpose.msra.mxu0 0.0
        %899 = vmatpush.xpose.msra.mxu0 0.0
        %900 = vmatpush.xpose.msra.mxu0 0.0
        %901 = vmatpush.xpose.msra.mxu0 0.0
        %902 = vmatpush.xpose.msra.mxu0 0.0
        %903 = vmatpush.xpose.msra.mxu0 0.0
        %904 = vmatpush.xpose.msra.mxu0 0.0
        %905 = vmatpush.xpose.msra.mxu0 0.0
        %906 = vmatpush.xpose.msra.mxu0 0.0
        %907 = vmatpush.xpose.msra.mxu0 0.0
        %908 = vmatpush.xpose.msra.mxu0 0.0
        %909 = vmatpush.xpose.msra.mxu0 0.0
        %910 = vmatpush.xpose.msra.mxu0 0.0
        %911 = vmatpush.xpose.msra.mxu0 0.0
        %912 = vmatpush.xpose.msra.mxu0 %v895
        %913 = vmatmul.f32.gmra.mxu0 %v892
        %v914 = vpop.f32.mrf.mxu0
        %v915 = vadd.f32 %v862, %v914
        %916 = vdwg.mxu0
        %v918 = vsel %vm864, %v614, 0
        %v921 = vsel %vm864, %v736, 0
        %923 = vmatpush.xpose.msra.mxu0 0.0
        %924 = vmatpush.xpose.msra.mxu0 0.0
        %925 = vmatpush.xpose.msra.mxu0 0.0
        %926 = vmatpush.xpose.msra.mxu0 0.0
        %927 = vmatpush.xpose.msra.mxu0 0.0
        %928 = vmatpush.xpose.msra.mxu0 0.0
        %929 = vmatpush.xpose.msra.mxu0 0.0
        %930 = vmatpush.xpose.msra.mxu0 0.0
        %931 = vmatpush.xpose.msra.mxu0 0.0
        %932 = vmatpush.xpose.msra.mxu0 0.0
        %933 = vmatpush.xpose.msra.mxu0 0.0
        %934 = vmatpush.xpose.msra.mxu0 0.0
        %935 = vmatpush.xpose.msra.mxu0 0.0
        %936 = vmatpush.xpose.msra.mxu0 0.0
        %937 = vmatpush.xpose.msra.mxu0 0.0
        %938 = vmatpush.xpose.msra.mxu0 %v921
        %939 = vmatmul.f32.gmra.mxu0 %v918
        %v940 = vpop.f32.mrf.mxu0
        %v941 = vadd.f32 %v862, %v940
        %942 = vdwg.mxu0
        %v944 = vsel %vm864, %v616, 0
        %v947 = vsel %vm864, %v738, 0
        %949 = vmatpush.xpose.msra.mxu0 0.0
        %950 = vmatpush.xpose.msra.mxu0 0.0
        %951 = vmatpush.xpose.msra.mxu0 0.0
        %952 = vmatpush.xpose.msra.mxu0 0.0
        %953 = vmatpush.xpose.msra.mxu0 0.0
        %954 = vmatpush.xpose.msra.mxu0 0.0
        %955 = vmatpush.xpose.msra.mxu0 0.0
        %956 = vmatpush.xpose.msra.mxu0 0.0
        %957 = vmatpush.xpose.msra.mxu0 0.0
        %958 = vmatpush.xpose.msra.mxu0 0.0
        %959 = vmatpush.xpose.msra.mxu0 0.0
        %960 = vmatpush.xpose.msra.mxu0 0.0
        %961 = vmatpush.xpose.msra.mxu0 0.0
        %962 = vmatpush.xpose.msra.mxu0 0.0
        %963 = vmatpush.xpose.msra.mxu0 0.0
        %964 = vmatpush.xpose.msra.mxu0 %v947
        %965 = vmatmul.f32.gmra.mxu0 %v944
        %v966 = vpop.f32.mrf.mxu0
        %v967 = vadd.f32 %v862, %v966
        %968 = vdwg.mxu0
        %v969 = vsel %vm864, %v889, -inf
        %970 = vmax.xlane.f32.xlu0 %v969
        %v971 = vpop.xlane.xlu0 %970
        %v972 = vsel %vm864, %v915, -inf
        %973 = vmax.xlane.f32.xlu0 %v972
        %v974 = vpop.xlane.xlu0 %973
        %v975 = vsel %vm864, %v941, -inf
        %976 = vmax.xlane.f32.xlu0 %v975
        %v977 = vpop.xlane.xlu0 %976
        %v978 = vsel %vm864, %v967, -inf
        %979 = vmax.xlane.f32.xlu0 %v978
        %v980 = vpop.xlane.xlu0 %979
        %v981 = vsub.f32 %v889, %v971
        %v982 = vsub.f32 %v915, %v974
        %v983 = vsub.f32 %v941, %v977
        %v984 = vsub.f32 %v967, %v980
        %v985 = vmul.f32 %v981, 1.442695
        %v986 = vpow.pop %v985
        %v987 = vmul.f32 %v982, 1.442695
        %v988 = vpow.pop %v987
        %v989 = vmul.f32 %v983, 1.442695
        %v990 = vpow.pop %v989
        %v991 = vmul.f32 %v984, 1.442695
        %v992 = vpow.pop %v991
        %v993 = vsel %vm864, %v986, 0.0
        %994 = vadd.xlane.f32.xlu0 %v993
        %v995 = vpop.xlane.xlu0 %994
        %v996 = vsel %vm864, %v988, 0.0
        %997 = vadd.xlane.f32.xlu0 %v996
        %v998 = vpop.xlane.xlu0 %997
        %v999 = vsel %vm864, %v990, 0.0
        %1000 = vadd.xlane.f32.xlu0 %v999
        %v1001 = vpop.xlane.xlu0 %1000
        %v1002 = vsel %vm864, %v992, 0.0
        %1003 = vadd.xlane.f32.xlu0 %v1002
        %v1004 = vpop.xlane.xlu0 %1003
        %v1005 = vrcp.pop %v995
        %v1006 = vmul.f32 %v995, %v1005
        %v1007 = vsub.f32 1.0, %v1006
        %v1008 = vmul.f32 %v1005, %v1007
        %v1009 = vadd.f32 %v1005, %v1008
        %vm1010 = vweird.f32 %v995
        %vm1011 = vweird.f32 %v1005
        %vm1012 = vmor %vm1010, %vm1011
        %v1013 = vsel %vm1012, %v1005, %v1009
        %v1014 = vand.u32 2147483647, %v995
        %vm1015 = vcmp.eq.f32.partialorder %v1014, 8.507059e+37
        %v1016 = vand.u32 %v995, 2147483648
        %v1017 = vor.u32 1.1754944e-38, %v1016
        %v1018 = vsel %vm1015, %v1017, %v1013
        %v1019 = vmul.f32 %v986, %v1018
        %v1020 = vrcp.pop %v998
        %v1021 = vmul.f32 %v998, %v1020
        %v1022 = vsub.f32 1.0, %v1021
        %v1023 = vmul.f32 %v1020, %v1022
        %v1024 = vadd.f32 %v1020, %v1023
        %vm1025 = vweird.f32 %v998
        %vm1026 = vweird.f32 %v1020
        %vm1027 = vmor %vm1025, %vm1026
        %v1028 = vsel %vm1027, %v1020, %v1024
        %v1029 = vand.u32 2147483647, %v998
        %vm1030 = vcmp.eq.f32.partialorder %v1029, 8.507059e+37
        %v1031 = vand.u32 %v998, 2147483648
        %v1032 = vor.u32 1.1754944e-38, %v1031
        %v1033 = vsel %vm1030, %v1032, %v1028
        %v1034 = vmul.f32 %v988, %v1033
        %v1035 = vrcp.pop %v1001
        %v1036 = vmul.f32 %v1001, %v1035
        %v1037 = vsub.f32 1.0, %v1036
        %v1038 = vmul.f32 %v1035, %v1037
        %v1039 = vadd.f32 %v1035, %v1038
        %vm1040 = vweird.f32 %v1001
        %vm1041 = vweird.f32 %v1035
        %vm1042 = vmor %vm1040, %vm1041
        %v1043 = vsel %vm1042, %v1035, %v1039
        %v1044 = vand.u32 2147483647, %v1001
        %vm1045 = vcmp.eq.f32.partialorder %v1044, 8.507059e+37
        %v1046 = vand.u32 %v1001, 2147483648
        %v1047 = vor.u32 1.1754944e-38, %v1046
        %v1048 = vsel %vm1045, %v1047, %v1043
        %v1049 = vmul.f32 %v990, %v1048
        %v1050 = vrcp.pop %v1004
        %v1051 = vmul.f32 %v1004, %v1050
        %v1052 = vsub.f32 1.0, %v1051
        %v1053 = vmul.f32 %v1050, %v1052
        %v1054 = vadd.f32 %v1050, %v1053
        %vm1055 = vweird.f32 %v1004
        %vm1056 = vweird.f32 %v1050
        %vm1057 = vmor %vm1055, %vm1056
        %v1058 = vsel %vm1057, %v1050, %v1054
        %v1059 = vand.u32 2147483647, %v1004
        %vm1060 = vcmp.eq.f32.partialorder %v1059, 8.507059e+37
        %v1061 = vand.u32 %v1004, 2147483648
        %v1062 = vor.u32 1.1754944e-38, %v1061
        %v1063 = vsel %vm1060, %v1062, %v1058
        %v1064 = vmul.f32 %v992, %v1063
        %v1066 = vsel %vm864, %v1019, 0
        %1068 = vmatpush.msra.mxu0 0.0
        %1069 = vmatpush.msra.mxu0 0.0
        %1070 = vmatpush.msra.mxu0 0.0
        %1071 = vmatpush.msra.mxu0 0.0
        %1072 = vmatpush.msra.mxu0 0.0
        %1073 = vmatpush.msra.mxu0 0.0
        %1074 = vmatpush.msra.mxu0 0.0
        %1075 = vmatpush.msra.mxu0 0.0
        %1076 = vmatpush.msra.mxu0 0.0
        %1077 = vmatpush.msra.mxu0 0.0
        %1078 = vmatpush.msra.mxu0 0.0
        %1079 = vmatpush.msra.mxu0 0.0
        %1080 = vmatpush.msra.mxu0 0.0
        %1081 = vmatpush.msra.mxu0 0.0
        %1082 = vmatpush.msra.mxu0 0.0
        %1083 = vmatpush.msra.mxu0 %v854
        %1084 = vmatmul.f32.gmra.mxu0 %v1066
        %v1085 = vpop.f32.mrf.mxu0
        %v1086 = vadd.f32 0.0, %v1085
        %1087 = vdwg.mxu0
        %v1089 = vsel %vm864, %v1034, 0
        %1091 = vmatpush.msra.mxu0 0.0
        %1092 = vmatpush.msra.mxu0 0.0
        %1093 = vmatpush.msra.mxu0 0.0
        %1094 = vmatpush.msra.mxu0 0.0
        %1095 = vmatpush.msra.mxu0 0.0
        %1096 = vmatpush.msra.mxu0 0.0
        %1097 = vmatpush.msra.mxu0 0.0
        %1098 = vmatpush.msra.mxu0 0.0
        %1099 = vmatpush.msra.mxu0 0.0
        %1100 = vmatpush.msra.mxu0 0.0
        %1101 = vmatpush.msra.mxu0 0.0
        %1102 = vmatpush.msra.mxu0 0.0
        %1103 = vmatpush.msra.mxu0 0.0
        %1104 = vmatpush.msra.mxu0 0.0
        %1105 = vmatpush.msra.mxu0 0.0
        %1106 = vmatpush.msra.mxu0 %v856
        %1107 = vmatmul.f32.gmra.mxu0 %v1089
        %v1108 = vpop.f32.mrf.mxu0
        %v1109 = vadd.f32 0.0, %v1108
        %1110 = vdwg.mxu0
        %v1112 = vsel %vm864, %v1049, 0
        %1114 = vmatpush.msra.mxu0 0.0
        %1115 = vmatpush.msra.mxu0 0.0
        %1116 = vmatpush.msra.mxu0 0.0
        %1117 = vmatpush.msra.mxu0 0.0
        %1118 = vmatpush.msra.mxu0 0.0
        %1119 = vmatpush.msra.mxu0 0.0
        %1120 = vmatpush.msra.mxu0 0.0
        %1121 = vmatpush.msra.mxu0 0.0
        %1122 = vmatpush.msra.mxu0 0.0
        %1123 = vmatpush.msra.mxu0 0.0
        %1124 = vmatpush.msra.mxu0 0.0
        %1125 = vmatpush.msra.mxu0 0.0
        %1126 = vmatpush.msra.mxu0 0.0
        %1127 = vmatpush.msra.mxu0 0.0
        %1128 = vmatpush.msra.mxu0 0.0
        %1129 = vmatpush.msra.mxu0 %v858
        %1130 = vmatmul.f32.gmra.mxu0 %v1112
        %v1131 = vpop.f32.mrf.mxu0
        %v1132 = vadd.f32 0.0, %v1131
        %1133 = vdwg.mxu0
        %v1135 = vsel %vm864, %v1064, 0
        %1137 = vmatpush.msra.mxu0 0.0
        %1138 = vmatpush.msra.mxu0 0.0
        %1139 = vmatpush.msra.mxu0 0.0
        %1140 = vmatpush.msra.mxu0 0.0
        %1141 = vmatpush.msra.mxu0 0.0
        %1142 = vmatpush.msra.mxu0 0.0
        %1143 = vmatpush.msra.mxu0 0.0
        %1144 = vmatpush.msra.mxu0 0.0
        %1145 = vmatpush.msra.mxu0 0.0
        %1146 = vmatpush.msra.mxu0 0.0
        %1147 = vmatpush.msra.mxu0 0.0
        %1148 = vmatpush.msra.mxu0 0.0
        %1149 = vmatpush.msra.mxu0 0.0
        %1150 = vmatpush.msra.mxu0 0.0
        %1151 = vmatpush.msra.mxu0 0.0
        %1152 = vmatpush.msra.mxu0 %v860
        %1153 = vmatmul.f32.gmra.mxu0 %v1135
        %v1154 = vpop.f32.mrf.mxu0
        %v1155 = vadd.f32 0.0, %v1154
        %1156 = vdwg.mxu0
        %v1157 = vrot.slane %v1132, 4
        %v1158 = vsel %vm507, %v1157, %v1086
        %v1159 = vrot.slane %v1086, 4
        %v1160 = vsel %vm507, %v1132, %v1159
        %v1162 = vunpack.c.l.s4 1983009808
        %v1163 = vunpack.c.0.s8 %v1162
        %v1164 = vperm.slane %v1158, %v1163
        %v1166 = vunpack.c.l.s4 1983009808
        %v1167 = vunpack.c.0.s8 %v1166
        %v1168 = vperm.slane %v1160, %v1167
        %v1169 = vrot.slane %v1155, 4
        %v1170 = vsel %vm507, %v1169, %v1109
        %v1171 = vrot.slane %v1109, 4
        %v1172 = vsel %vm507, %v1155, %v1171
        %v1174 = vunpack.c.l.s4 1983009808
        %v1175 = vunpack.c.0.s8 %v1174
        %v1176 = vperm.slane %v1170, %v1175
        %v1178 = vunpack.c.l.s4 1983009808
        %v1179 = vunpack.c.0.s8 %v1178
        %v1180 = vperm.slane %v1172, %v1179
        %v1181 = vrot.slane %v1176, 4
        %v1182 = vsel %vm507, %v1181, %v1164
        %v1183 = vrot.slane %v1164, 4
        %v1184 = vsel %vm507, %v1176, %v1183
        %v1186 = vunpack.c.l.s4 1934713408
        %v1187 = vunpack.c.0.s8 %v1186
        %v1188 = vperm.slane %v1182, %v1187
        %v1190 = vunpack.c.l.s4 1934713408
        %v1191 = vunpack.c.0.s8 %v1190
        %v1192 = vperm.slane %v1184, %v1191
        %v1193 = vrot.slane %v1180, 4
        %v1194 = vsel %vm507, %v1193, %v1168
        %v1195 = vrot.slane %v1168, 4
        %v1196 = vsel %vm507, %v1180, %v1195
        %v1198 = vunpack.c.l.s4 1934713408
        %v1199 = vunpack.c.0.s8 %v1198
        %v1200 = vperm.slane %v1194, %v1199
        %v1202 = vunpack.c.l.s4 1934713408
        %v1203 = vunpack.c.0.s8 %v1202
        %v1204 = vperm.slane %v1196, %v1203
        %v1205 = vrot.slane %v1188, 4
        %v1206 = vsel %vm507, 0.0, %v1205
        %v1207 = vrot.slane %v1192, 4
        %v1208 = vsel %vm507, 0.0, %v1207
        %v1209 = vrot.slane %v1200, 4
        %v1210 = vsel %vm507, 0.0, %v1209
        %v1211 = vrot.slane %v1204, 4
        %v1212 = vsel %vm507, 0.0, %v1211
        %v1213 = vsel %vm507, %v1207, %v1188
        %v1215 = vunpack.c.l.s4 1983009808
        %v1216 = vunpack.c.0.s8 %v1215
        %v1217 = vperm.slane %v1213, %v1216
        %v1218 = vrot.slane %v1208, 4
        %v1219 = vsel %vm507, %v1218, %v1206
        %v1221 = vunpack.c.l.s4 1983009808
        %v1222 = vunpack.c.0.s8 %v1221
        %v1223 = vperm.slane %v1219, %v1222
        %v1224 = vsel %vm507, %v1211, %v1200
        %v1226 = vunpack.c.l.s4 1983009808
        %v1227 = vunpack.c.0.s8 %v1226
        %v1228 = vperm.slane %v1224, %v1227
        %v1229 = vrot.slane %v1212, 4
        %v1230 = vsel %vm507, %v1229, %v1210
        %v1232 = vunpack.c.l.s4 1983009808
        %v1233 = vunpack.c.0.s8 %v1232
        %v1234 = vperm.slane %v1230, %v1233
        %v1235 = vrot.slane %v1223, 4
        %v1236 = vsel %vm507, %v1235, %v1217
        %v1237 = vrot.slane %v1217, 4
        %v1238 = vsel %vm507, %v1223, %v1237
        %v1240 = vunpack.c.l.s4 1934713408
        %v1241 = vunpack.c.0.s8 %v1240
        %v1242 = vperm.slane %v1236, %v1241
        %v1244 = vunpack.c.l.s4 1934713408
        %v1245 = vunpack.c.0.s8 %v1244
        %v1246 = vperm.slane %v1238, %v1245
        %v1247 = vrot.slane %v1234, 4
        %v1248 = vsel %vm507, %v1247, %v1228
        %v1249 = vrot.slane %v1228, 4
        %v1250 = vsel %vm507, %v1234, %v1249
        %v1252 = vunpack.c.l.s4 1934713408
        %v1253 = vunpack.c.0.s8 %v1252
        %v1254 = vperm.slane %v1248, %v1253
        %v1256 = vunpack.c.l.s4 1934713408
        %v1257 = vunpack.c.0.s8 %v1256
        %v1258 = vperm.slane %v1250, %v1257
        %v1259 = vrot.slane %v1254, 4
        %v1260 = vsel %vm507, %v1259, %v1242
        %v1261 = vrot.slane %v1242, 4
        %v1262 = vsel %vm507, %v1254, %v1261
        %v1263 = vrot.slane %v1258, 4
        %v1264 = vsel %vm507, %v1263, %v1246
        %v1265 = vrot.slane %v1246, 4
        %v1266 = vsel %vm507, %v1258, %v1265
        %1268 = vrot.lane.b32.xlu0 %v1262, 8
        %v1269 = vpop.permute.xlu0 %1268
        %1272 = vrot.lane.b32.xlu0 %v1264, 16
        %v1273 = vpop.permute.xlu0 %1272
        %1276 = vrot.lane.b32.xlu0 %v1266, 24
        %v1277 = vpop.permute.xlu0 %1276
        %v1279 = vsel %vm864, %v1260, %v1269
        %vm1280 = vcmask 130048
        %v1281 = vsel %vm1280, %v1279, %v1273
        %vm1282 = vcmask 195584
        %v1283 = vsel %vm1282, %v1281, %v1277
        %v1284 = vld [vmem:[%s378] sm:$0xff]
        %v1285 = vld [vmem:[%s448] sm:$0xff]
        %v1286 = vld [vmem:[%s448 + $0x8] sm:$0xff]
        %v1287 = vld [vmem:[%s448 + $0x10] sm:$0xff]
        %v1288 = vld [vmem:[%s448 + $0x18] sm:$0xff]
        %v1289 = vperm.slane %v1284, 0
        %v1291 = vsel %vm472, %v1283, 0
        %1293 = vmatpush.msra.mxu0 0.0
        %1294 = vmatpush.msra.mxu0 0.0
        %1295 = vmatpush.msra.mxu0 0.0
        %1296 = vmatpush.msra.mxu0 0.0
        %1297 = vmatpush.msra.mxu0 0.0
        %1298 = vmatpush.msra.mxu0 0.0
        %1299 = vmatpush.msra.mxu0 0.0
        %1300 = vmatpush.msra.mxu0 0.0
        %1301 = vmatpush.msra.mxu0 0.0
        %1302 = vmatpush.msra.mxu0 0.0
        %1303 = vmatpush.msra.mxu0 0.0
        %1304 = vmatpush.msra.mxu0 0.0
        %1305 = vmatpush.msra.mxu0 %v1288
        %1306 = vmatpush.msra.mxu0 %v1287
        %1307 = vmatpush.msra.mxu0 %v1286
        %1308 = vmatpush.msra.mxu0 %v1285
        %1309 = vmatmul.f32.gmra.mxu0 %v1291
        %v1310 = vpop.f32.mrf.mxu0
        %v1311 = vadd.f32 %v1289, %v1310
        %1312 = vdwg.mxu0
        %v1313 = vadd.f32 %v1311, %v466
        %v1314 = vsel %vm472, %v1313, 0.0
        %1315 = vadd.xlane.f32.xlu0 %v1314
        %v1316 = vpop.xlane.xlu0 %1315
        %v1317 = vrcp.pop 32.0
        %v1318 = vmul.f32 32.0, %v1317
        %v1319 = vsub.f32 1.0, %v1318
        %v1320 = vmul.f32 %v1317, %v1319
        %v1321 = vadd.f32 %v1317, %v1320
        %vm1322 = vweird.f32 %v1317
        %v1323 = vsel %vm1322, %v1317, %v1321
        %v1324 = vmul.f32 %v1316, %v1323
        %v1325 = vsub.f32 %v1313, %v1324
        %v1326 = vmul.f32 %v1325, %v1325
        %v1327 = vsel %vm472, %v1326, 0.0
        %1328 = vadd.xlane.f32.xlu0 %v1327
        %v1329 = vpop.xlane.xlu0 %1328
        %v1330 = vmul.f32 %v1329, %v1323
        %v1331 = vadd.f32 %v1330, 1e-05
        %v1332 = vrsqrt.pop %v1331
        %v1333 = vmul.f32 %v1332, %v1331
        %v1334 = vmul.f32 %v1333, %v1332
        %v1335 = vmul.f32 0.5, %v1334
        %v1336 = vsub.f32 1.5, %v1335
        %v1337 = vmul.f32 %v1332, %v1336
        %vm1338 = vweird.f32 %v1331
        %vm1339 = vweird.f32 %v1332
        %vm1340 = vmor %vm1338, %vm1339
        %v1341 = vsel %vm1340, %v1332, %v1337
        %v1342 = vmul.f32 %v1325, %v1341
        %v1343 = vperm.slane %v1284, 1
        %v1344 = vmul.f32 %v1342, %v1343
        %v1345 = vperm.slane %v1284, 2
        %v1346 = vadd.f32 %v1344, %v1345
        %v1347 = vld [vmem:[%s453] sm:$0xff]
        %v1348 = vld [vmem:[%s453 + $0x8] sm:$0xff]
        %v1349 = vld [vmem:[%s453 + $0x10] sm:$0xff]
        %v1350 = vld [vmem:[%s453 + $0x18] sm:$0xff]
        %v1351 = vperm.slane %v1284, 3
        %v1353 = vsel %vm472, %v1346, 0
        %1355 = vmatpush.msra.mxu0 0.0
        %1356 = vmatpush.msra.mxu0 0.0
        %1357 = vmatpush.msra.mxu0 0.0
        %1358 = vmatpush.msra.mxu0 0.0
        %1359 = vmatpush.msra.mxu0 0.0
        %1360 = vmatpush.msra.mxu0 0.0
        %1361 = vmatpush.msra.mxu0 0.0
        %1362 = vmatpush.msra.mxu0 0.0
        %1363 = vmatpush.msra.mxu0 0.0
        %1364 = vmatpush.msra.mxu0 0.0
        %1365 = vmatpush.msra.mxu0 0.0
        %1366 = vmatpush.msra.mxu0 0.0
        %1367 = vmatpush.msra.mxu0 %v1350
        %1368 = vmatpush.msra.mxu0 %v1349
        %1369 = vmatpush.msra.mxu0 %v1348
        %1370 = vmatpush.msra.mxu0 %v1347
        %1371 = vmatmul.f32.gmra.mxu0 %v1353
        %v1372 = vpop.f32.mrf.mxu0
        %v1373 = vadd.f32 %v1351, %v1372
        %1374 = vdwg.mxu0
        %v1375 = vmax.f32 %v1373, 0.0
        %v1376 = vld [vmem:[%s458] sm:$0xff]
        %v1377 = vld [vmem:[%s458 + $0x8] sm:$0xff]
        %v1378 = vld [vmem:[%s458 + $0x10] sm:$0xff]
        %v1379 = vld [vmem:[%s458 + $0x18] sm:$0xff]
        %v1380 = vld [vmem:[%s458 + $0x20] sm:$0xff]
        %v1381 = vld [vmem:[%s458 + $0x28] sm:$0xff]
        %v1382 = vld [vmem:[%s458 + $0x30] sm:$0xff]
        %v1383 = vld [vmem:[%s458 + $0x38] sm:$0xff]
        %v1384 = vperm.slane %v1284, 4
        %vm1385 = vcmask 523264
        %v1387 = vsel %vm1385, %v1375, 0
        %1389 = vmatpush.msra.mxu0 0.0
        %1390 = vmatpush.msra.mxu0 0.0
        %1391 = vmatpush.msra.mxu0 0.0
        %1392 = vmatpush.msra.mxu0 0.0
        %1393 = vmatpush.msra.mxu0 0.0
        %1394 = vmatpush.msra.mxu0 0.0
        %1395 = vmatpush.msra.mxu0 0.0
        %1396 = vmatpush.msra.mxu0 0.0
        %1397 = vmatpush.msra.mxu0 %v1383
        %1398 = vmatpush.msra.mxu0 %v1382
        %1399 = vmatpush.msra.mxu0 %v1381
        %1400 = vmatpush.msra.mxu0 %v1380
        %1401 = vmatpush.msra.mxu0 %v1379
        %1402 = vmatpush.msra.mxu0 %v1378
        %1403 = vmatpush.msra.mxu0 %v1377
        %1404 = vmatpush.msra.mxu0 %v1376
        %1405 = vmatmul.f32.gmra.mxu0 %v1387
        %v1406 = vpop.f32.mrf.mxu0
        %v1407 = vadd.f32 %v1384, %v1406
        %1408 = vdwg.mxu0
        %v1409 = vadd.f32 %v1407, %v1346
        %v1410 = vsel %vm472, %v1409, 0.0
        %1411 = vadd.xlane.f32.xlu0 %v1410
        %v1412 = vpop.xlane.xlu0 %1411
        %v1413 = vmul.f32 %v1412, %v1323
        %v1414 = vsub.f32 %v1409, %v1413
        %v1415 = vmul.f32 %v1414, %v1414
        %v1416 = vsel %vm472, %v1415, 0.0
        %1417 = vadd.xlane.f32.xlu0 %v1416
        %v1418 = vpop.xlane.xlu0 %1417
        %v1419 = vmul.f32 %v1418, %v1323
        %v1420 = vadd.f32 %v1419, 1e-05
        %v1421 = vrsqrt.pop %v1420
        %v1422 = vmul.f32 %v1421, %v1420
        %v1423 = vmul.f32 %v1422, %v1421
        %v1424 = vmul.f32 0.5, %v1423
        %v1425 = vsub.f32 1.5, %v1424
        %v1426 = vmul.f32 %v1421, %v1425
        %vm1427 = vweird.f32 %v1420
        %vm1428 = vweird.f32 %v1421
        %vm1429 = vmor %vm1427, %vm1428
        %v1430 = vsel %vm1429, %v1421, %v1426
        %v1431 = vmul.f32 %v1414, %v1430
        %v1432 = vperm.slane %v1284, 5
        %v1433 = vmul.f32 %v1431, %v1432
        %v1434 = vperm.slane %v1284, 6
        %v1435 = vadd.f32 %v1433, %v1434
        %1436 = vst.msk [vmem:[%s438] sm:$0xff] %vm472, %v1435
        %s1437 = sand.u32 %s229, 1
        %s1438 = scalar_lea.sflag [#allocation4], %s1437
        %s1439 = sand.u32 %s229, 1
        %s1440 = smul.addr %s1439, 8
        %s1441 = scalar_lea.vmem [#allocation8], %s1440
        // Predicated region
        $region65: #{tpu_custom_call.1} parent=47 // pred_check
          %p1442 = pneg %p239
        $region66: #{tpu_custom_call.1} parent=47 // pred_check_branch
          %1444 = sbr.rel (%p1442) target = $region68
        $region67: #{tpu_custom_call.1} parent=47 // pred_region
          %1446 = vsyncadd %s1438, 0
          %s1447 = smul.addr %s31, 8
          %s1448 = scalar_lea.hbm %s7, %s1447
          %s1450 = sshll.u32 %s1441, 4
          %s1451 = int_to_ptr.vmem [resolvable:$true] %s1450
          %s1452 = sshll.u32 %s1448, 4
          %s1453 = int_to_ptr.hbm [resolvable:$true] %s1452
          %1455 = dma.vmem_to_hbm [thread:$0]  %s1451, 128, %s1453, %s1438
        $region68: #{tpu_custom_call.1} parent=47 // pred_fallthru
          _
      $region48: #{tpu_custom_call.1} parent=5 // pred_fallthru
        _
      %p1456 = scmp.le.s32.totalorder 2, %s22
      // Predicated region
      $region69: #{tpu_custom_call.1} parent=5 // pred_check
        %p1457 = pneg %p1456
      $region70: #{tpu_custom_call.1} parent=5 // pred_check_branch
        %1459 = sbr.rel (%p1457) target = $region72
      $region71: #{tpu_custom_call.1} parent=5 // pred_region
        %s1460 = ssub.s32 %s22, 2
        // Predicated region
        $region73: #{tpu_custom_call.1} parent=71 // pred_check
          %p1461 = pneg %p245
        $region74: #{tpu_custom_call.1} parent=71 // pred_check_branch
          %1463 = sbr.rel (%p1461) target = $region76
        $region75: #{tpu_custom_call.1} parent=71 // pred_region
          %s1464 = sand.u32 %s230, 1
          %s1465 = scalar_lea.sflag [#allocation4], %s1464
          %s1466 = sand.u32 %s230, 1
          %s1467 = smul.addr %s1466, 8
          %s1468 = scalar_lea.vmem [#allocation8], %s1467
          %1470 = dma.done %s1465, 128
        $region76: #{tpu_custom_call.1} parent=71 // pred_fallthru
          _
      $region72: #{tpu_custom_call.1} parent=5 // pred_fallthru
        _
    $region6: #{tpu_custom_call.1} parent=1 // loop_footer
      %s26 = sadd.s32 1, %s22
    $region7: #{tpu_custom_call.1} parent=1 // loop_footer_branch
      %21 = sbr.rel target = $region3
    $region8: #{tpu_custom_call.1} parent=1 // loop_exit
      _
    %1471 = vsyncpa [#allocation3], 1
    %s1472 = scalar_lea.sflag [#allocation3], 1
    %1473 = vsyncpa %s1472, 1
    %1474 = vsyncpa [#allocation6], 1
    %s1475 = scalar_lea.sflag [#allocation6], 1
    %1476 = vsyncpa %s1475, 1
    %1477 = vsyncpa [#allocation4], 1
    %s1478 = scalar_lea.sflag [#allocation4], 1
    %1479 = vsyncpa %s1478, 1

</llo_original>
